<compile_context>
chip_gen: v5e
topology: v5e:2x2
jax: 0.10.0
libtpu: 0.0.40
codegen_flags: <defaults>
</compile_context>

<pallas_src>
import functools
import math

import jax
import jax.numpy as jnp
from jax import lax
from jax.experimental import pallas as pl
from jax.experimental.pallas import tpu as pltpu


def _layer_norm(x, gamma, beta, eps):
    # PyTorch nn.LayerNorm: biased variance over last dim, f32 throughout.
    mean = jnp.mean(x, axis=-1, keepdims=True)
    var = jnp.mean((x - mean) ** 2, axis=-1, keepdims=True)
    return (x - mean) * lax.rsqrt(var + eps) * gamma + beta


def bert_layer_kernel(x_ref,
                      ln1_g_ref, ln1_b_ref,
                      wqkv_ref, bqkv_ref,
                      wo_ref, bo_ref,
                      ln2_g_ref, ln2_b_ref,
                      w1_ref, b1_ref, w2_ref, b2_ref,
                      out_ref,
                      ctx_ref,
                      *, num_heads, head_size, layer_norm_eps):
    layer = pl.program_id(1)

    # First layer for this batch block: seed the VMEM-resident activation.
    @pl.when(layer == 0)
    def _():
        out_ref[...] = x_ref[...]

    x = out_ref[0].astype(jnp.float32)          # (S, H) carried activation
    S, H = x.shape
    w_dtype = wqkv_ref.dtype                    # bf16 (perf) or f32

    # ---------------- Attention block ----------------
    ln1 = _layer_norm(x, ln1_g_ref[0], ln1_b_ref[0], layer_norm_eps)
    # Fused Q/K/V projection: one MXU stream with N = 3H.  The 1/sqrt(d) score
    # scale is already folded into the Q columns of wqkv / bqkv.
    qkv = jnp.dot(ln1.astype(w_dtype), wqkv_ref[0],
                  preferred_element_type=jnp.float32) + bqkv_ref[0]
    q = qkv[:, 0 * H:1 * H]
    k = qkv[:, 1 * H:2 * H]
    v = qkv[:, 2 * H:3 * H]

    for h in range(num_heads):                  # static -> unrolled
        lo = h * head_size
        qh = q[:, lo:lo + head_size].astype(w_dtype)
        kh = k[:, lo:lo + head_size].astype(w_dtype)
        vh = v[:, lo:lo + head_size].astype(w_dtype)
        # q @ k^T without materializing k^T (MXU consumes transposed operand).
        s = lax.dot_general(qh, kh, (((1,), (1,)), ((), ())),
                            preferred_element_type=jnp.float32)
        s = s - jnp.max(s, axis=-1, keepdims=True)
        p = jnp.exp(s)
        p = p * pl.reciprocal(jnp.sum(p, axis=-1, keepdims=True), approx=True)
        # Write into a lane-dense (S, H) scratch (held in the MXU operand
        # dtype) instead of concatenating sub-128-lane per-head slabs.
        ctx_ref[:, lo:lo + head_size] = jnp.dot(
            p.astype(w_dtype), vh,
            preferred_element_type=jnp.float32).astype(ctx_ref.dtype)

    attn = jnp.dot(ctx_ref[...], wo_ref[0],
                   preferred_element_type=jnp.float32) + bo_ref[0]
    x = x + attn                                # residual (f32)

    # ---------------- Feed-forward block ----------------
    ln2 = _layer_norm(x, ln2_g_ref[0], ln2_b_ref[0], layer_norm_eps)
    inter = jnp.dot(ln2.astype(w_dtype), w1_ref[0],
                    preferred_element_type=jnp.float32) + b1_ref[0]
    inter = jnp.maximum(inter, 0.0)             # hidden_act='ReLU'
    ff = jnp.dot(inter.astype(w_dtype), w2_ref[0],
                 preferred_element_type=jnp.float32) + b2_ref[0]

    out_ref[0] = (x + ff).astype(out_ref.dtype)  # residual; stays VMEM-resident


def bert_encoder_pallas(x, layer_params, *, num_heads, head_size,
                        layer_norm_eps, weight_dtype=jnp.bfloat16):
    """NO_PARAMETERS_SHARING: per-layer params stacked on a leading L axis."""
    B, S, H = x.shape
    L = len(layer_params)
    assert num_heads * head_size == H
    I = layer_params[0]["w1"].shape[1]

    inv_sqrt_d = 1.0 / math.sqrt(float(head_size))

    def stack(fn, dtype=None):
        a = jnp.stack([fn(p) for p in layer_params], axis=0)
        return a.astype(dtype) if dtype is not None else a

    params = [
        stack(lambda p: p["ln1_g"]), stack(lambda p: p["ln1_b"]),
        # fused QKV weight (H, 3H) / bias (1, 3H); 1/sqrt(d) folded into Q part
        stack(lambda p: jnp.concatenate(
            [p["wq"] * inv_sqrt_d, p["wk"], p["wv"]], axis=1), weight_dtype),
        stack(lambda p: jnp.concatenate(
            [p["bq"] * inv_sqrt_d, p["bk"], p["bv"]], axis=1)),
        stack(lambda p: p["wo"], weight_dtype), stack(lambda p: p["bo"]),
        stack(lambda p: p["ln2_g"]), stack(lambda p: p["ln2_b"]),
        stack(lambda p: p["w1"], weight_dtype), stack(lambda p: p["b1"]),
        stack(lambda p: p["w2"], weight_dtype), stack(lambda p: p["b2"]),
    ]

    def param_spec(arr):
        blk = (1,) + arr.shape[1:]
        zeros = (0,) * (arr.ndim - 1)
        return pl.BlockSpec(blk, lambda b, l, _z=zeros: (l,) + _z)

    act_spec = pl.BlockSpec((1, S, H), lambda b, l: (b, 0, 0))

    kern = functools.partial(bert_layer_kernel,
                             num_heads=num_heads, head_size=head_size,
                             layer_norm_eps=layer_norm_eps)

    # VMEM budget: double-buffered activation blocks + double-buffered
    # per-layer weight slabs + ctx scratch + rough working set, with headroom;
    # clamp to the smallest physical VMEM (v7x: 64 MiB).
    per_layer_param_bytes = sum(
        math.prod(p.shape[1:]) * p.dtype.itemsize for p in params)
    act_bytes = S * H * x.dtype.itemsize
    work_bytes = (S * 3 * H + S * S + S * I + 4 * S * H) * 4
    ctx_bytes = S * H * jnp.dtype(weight_dtype).itemsize
    est = 4 * act_bytes + 2 * per_layer_param_bytes + ctx_bytes + work_bytes
    vmem_limit = int(min(max(est * 3 // 2, 32 * 1024 * 1024),
                         64 * 1024 * 1024))

    return pl.pallas_call(
        kern,
        out_shape=jax.ShapeDtypeStruct((B, S, H), x.dtype),
        grid=(B, L),
        in_specs=[act_spec] + [param_spec(p) for p in params],
        out_specs=act_spec,
        scratch_shapes=[pltpu.VMEM((S, H), weight_dtype)],
        compiler_params=pltpu.CompilerParams(
            dimension_semantics=("parallel", "arbitrary"),
            vmem_limit_bytes=vmem_limit),
    )(x, *params)


# ---------------- pure-JAX reference (exact module semantics, f32) ----------------
def bert_layer_ref(x, p, *, num_heads, head_size, eps):
    def ln(y, g, b):
        m = y.mean(-1, keepdims=True)
        v = ((y - m) ** 2).mean(-1, keepdims=True)
        return (y - m) / jnp.sqrt(v + eps) * g + b

    B, S, H = x.shape
    ln1 = ln(x, p["ln1_g"], p["ln1_b"])
    q = ln1 @ p["wq"] + p["bq"]
    k = ln1 @ p["wk"] + p["bk"]
    v = ln1 @ p["wv"] + p["bv"]
    qh = q.reshape(B, S, num_heads, head_size).transpose(0, 2, 1, 3)
    kh = k.reshape(B, S, num_heads, head_size).transpose(0, 2, 1, 3)
    vh = v.reshape(B, S, num_heads, head_size).transpose(0, 2, 1, 3)
    scores = jnp.einsum("bhqd,bhkd->bhqk", qh, kh) / math.sqrt(float(head_size))
    probs = jax.nn.softmax(scores, axis=-1)
    ctx = jnp.einsum("bhqk,bhkd->bhqd", probs, vh)
    ctx = ctx.transpose(0, 2, 1, 3).reshape(B, S, H)
    x = x + ctx @ p["wo"] + p["bo"]
    ln2 = ln(x, p["ln2_g"], p["ln2_b"])
    inter = jnp.maximum(ln2 @ p["w1"] + p["b1"], 0.0)
    x = x + inter @ p["w2"] + p["b2"]
    return x


def init_layer_params(key, H, I):
    ks = jax.random.split(key, 12)

    def w(k, shape):
        return jax.random.normal(k, shape, jnp.float32) * 0.02

    return dict(
        ln1_g=jnp.ones((1, H), jnp.float32), ln1_b=jnp.zeros((1, H), jnp.float32),
        wq=w(ks[0], (H, H)), bq=w(ks[1], (1, H)),
        wk=w(ks[2], (H, H)), bk=w(ks[3], (1, H)),
        wv=w(ks[4], (H, H)), bv=w(ks[5], (1, H)),
        wo=w(ks[6], (H, H)), bo=w(ks[7], (1, H)),
        ln2_g=jnp.ones((1, H), jnp.float32), ln2_b=jnp.zeros((1, H), jnp.float32),
        w1=w(ks[8], (H, I)), b1=w(ks[9], (1, I)),
        w2=w(ks[10], (I, H)), b2=w(ks[11], (1, H)),
    )


if __name__ == "__main__":
    B, S, H = 2, 8, 32
    NUM_HEADS = 4
    HEAD_SIZE = H // NUM_HEADS
    INTERMEDIATE = 64
    NUM_LAYERS = 3
    LN_EPS = 1e-8

    key = jax.random.PRNGKey(0)
    kx, *layer_keys = jax.random.split(key, NUM_LAYERS + 1)
    x = jax.random.normal(kx, (B, S, H), jnp.float32)
    layer_params = [init_layer_params(k, H, INTERMEDIATE) for k in layer_keys]

    ref = x
    for p in layer_params:
        ref = bert_layer_ref(ref, p, num_heads=NUM_HEADS, head_size=HEAD_SIZE,
                             eps=LN_EPS)

    # Tight correctness check: f32 weights (exact module precision).
    out_f32 = bert_encoder_pallas(x, layer_params, num_heads=NUM_HEADS,
                                  head_size=HEAD_SIZE, layer_norm_eps=LN_EPS,
                                  weight_dtype=jnp.float32)
    out_f32 = jax.block_until_ready(out_f32)
    assert out_f32.shape == (B, S, H)
    assert jnp.allclose(out_f32, ref, atol=2e-4, rtol=2e-4), \
        "Pallas (f32 weights) output mismatch vs reference"

    # Performance configuration: bf16 weights / bf16 MXU operands with f32
    # accumulation and f32 LayerNorm/softmax/residuals.  Loose sanity check.
    out_bf16 = bert_encoder_pallas(x, layer_params, num_heads=NUM_HEADS,
                                   head_size=HEAD_SIZE, layer_norm_eps=LN_EPS,
                                   weight_dtype=jnp.bfloat16)
    out_bf16 = jax.block_until_ready(out_bf16)
    assert jnp.allclose(out_bf16, ref, atol=5e-2, rtol=5e-2), \
        "Pallas (bf16 weights) output diverged from f32 reference"

    print("KERNEL_OK")
</pallas_src>

<mosaic_0001>
module attributes {stable_mosaic.version = 11 : i64} {
  func.func @bert_layer_kernel(%arg0: i32, %arg1: i32, %arg2: memref<1x8x32xf32, #tpu.memory_space<vmem>>, %arg3: memref<1x1x32xf32, #tpu.memory_space<vmem>>, %arg4: memref<1x1x32xf32, #tpu.memory_space<vmem>>, %arg5: memref<1x32x96xf32, #tpu.memory_space<vmem>>, %arg6: memref<1x1x96xf32, #tpu.memory_space<vmem>>, %arg7: memref<1x32x32xf32, #tpu.memory_space<vmem>>, %arg8: memref<1x1x32xf32, #tpu.memory_space<vmem>>, %arg9: memref<1x1x32xf32, #tpu.memory_space<vmem>>, %arg10: memref<1x1x32xf32, #tpu.memory_space<vmem>>, %arg11: memref<1x32x64xf32, #tpu.memory_space<vmem>>, %arg12: memref<1x1x64xf32, #tpu.memory_space<vmem>>, %arg13: memref<1x64x32xf32, #tpu.memory_space<vmem>>, %arg14: memref<1x1x32xf32, #tpu.memory_space<vmem>>, %arg15: memref<1x8x32xf32, #tpu.memory_space<vmem>>, %arg16: memref<8x32xf32, #tpu.memory_space<vmem>>) attributes {dimension_semantics = [#tpu.dimension_semantics<parallel>, #tpu.dimension_semantics<arbitrary>], iteration_bounds = array<i64: 2, 3>, scalar_prefetch = 0 : i64, scratch_operands = 1 : i64, tpu.core_type = #tpu.core_type<tc>, window_params = [{transform_indices = @transform_0, window_bounds = array<i64: 1, 8, 32>}, {transform_indices = @transform_1, window_bounds = array<i64: 1, 1, 32>}, {transform_indices = @transform_2, window_bounds = array<i64: 1, 1, 32>}, {transform_indices = @transform_3, window_bounds = array<i64: 1, 32, 96>}, {transform_indices = @transform_4, window_bounds = array<i64: 1, 1, 96>}, {transform_indices = @transform_5, window_bounds = array<i64: 1, 32, 32>}, {transform_indices = @transform_6, window_bounds = array<i64: 1, 1, 32>}, {transform_indices = @transform_7, window_bounds = array<i64: 1, 1, 32>}, {transform_indices = @transform_8, window_bounds = array<i64: 1, 1, 32>}, {transform_indices = @transform_9, window_bounds = array<i64: 1, 32, 64>}, {transform_indices = @transform_10, window_bounds = array<i64: 1, 1, 64>}, {transform_indices = @transform_11, window_bounds = array<i64: 1, 64, 32>}, {transform_indices = @transform_12, window_bounds = array<i64: 1, 1, 32>}, {transform_indices = @transform_13, window_bounds = array<i64: 1, 8, 32>}]} {
    %c0_i32 = arith.constant 0 : i32
    %0 = arith.cmpi eq, %arg1, %c0_i32 : i32
    %1 = arith.extui %0 : i1 to i32
    %c0_i32_0 = arith.constant 0 : i32
    %2 = arith.cmpi ne, %1, %c0_i32_0 : i32
    scf.if %2 {
      %c0_79 = arith.constant 0 : index
      %c0_80 = arith.constant 0 : index
      %c0_81 = arith.constant 0 : index
      %160 = vector.load %arg2[%c0_79, %c0_80, %c0_81] : memref<1x8x32xf32, #tpu.memory_space<vmem>>, vector<1x8x32xf32>
      %c0_82 = arith.constant 0 : index
      %c0_83 = arith.constant 0 : index
      %c0_84 = arith.constant 0 : index
      %161 = vector.load %arg15[%c0_82, %c0_83, %c0_84] : memref<1x8x32xf32, #tpu.memory_space<vmem>>, vector<1x8x32xf32>
      tpu.vector_store %arg15[%c0_82, %c0_83, %c0_84], %160 {strides = array<i32>} : memref<1x8x32xf32, #tpu.memory_space<vmem>>, vector<1x8x32xf32>,
    } else {
    }
    %c0 = arith.constant 0 : index
    %c0_1 = arith.constant 0 : index
    %c0_2 = arith.constant 0 : index
    %3 = vector.load %arg15[%c0, %c0_1, %c0_2] : memref<1x8x32xf32, #tpu.memory_space<vmem>>, vector<1x8x32xf32>
    %4 = vector.shape_cast %3 : vector<1x8x32xf32> to vector<8x32xf32>
    %c0_3 = arith.constant 0 : index
    %c0_4 = arith.constant 0 : index
    %c0_5 = arith.constant 0 : index
    %5 = vector.load %arg3[%c0_3, %c0_4, %c0_5] : memref<1x1x32xf32, #tpu.memory_space<vmem>>, vector<1x1x32xf32>
    %6 = vector.shape_cast %5 : vector<1x1x32xf32> to vector<1x32xf32>
    %c0_6 = arith.constant 0 : index
    %c0_7 = arith.constant 0 : index
    %c0_8 = arith.constant 0 : index
    %7 = vector.load %arg4[%c0_6, %c0_7, %c0_8] : memref<1x1x32xf32, #tpu.memory_space<vmem>>, vector<1x1x32xf32>
    %8 = vector.shape_cast %7 : vector<1x1x32xf32> to vector<1x32xf32>
    %cst = arith.constant dense<0.000000e+00> : vector<8xf32>
    %9 = vector.multi_reduction <add>, %4, %cst [1] : vector<8x32xf32> to vector<8xf32>
    %10 = vector.shape_cast %9 : vector<8xf32> to vector<8x1xf32>
    %cst_9 = arith.constant 3.200000e+01 : f32
    %11 = vector.broadcast %cst_9 : f32 to vector<8x1xf32>
    %12 = arith.divf %10, %11 : vector<8x1xf32>
    %13 = vector.broadcast %12 : vector<8x1xf32> to vector<8x32xf32>
    %14 = arith.subf %4, %13 : vector<8x32xf32>
    %15 = arith.mulf %14, %14 : vector<8x32xf32>
    %cst_10 = arith.constant dense<0.000000e+00> : vector<8xf32>
    %16 = vector.multi_reduction <add>, %15, %cst_10 [1] : vector<8x32xf32> to vector<8xf32>
    %17 = vector.shape_cast %16 : vector<8xf32> to vector<8x1xf32>
    %cst_11 = arith.constant 3.200000e+01 : f32
    %18 = vector.broadcast %cst_11 : f32 to vector<8x1xf32>
    %19 = arith.divf %17, %18 : vector<8x1xf32>
    %20 = vector.broadcast %12 : vector<8x1xf32> to vector<8x32xf32>
    %21 = arith.subf %4, %20 : vector<8x32xf32>
    %cst_12 = arith.constant 9.99999993E-9 : f32
    %22 = vector.broadcast %cst_12 : f32 to vector<8x1xf32>
    %23 = arith.addf %19, %22 : vector<8x1xf32>
    %24 = math.rsqrt %23 : vector<8x1xf32>
    %25 = vector.broadcast %24 : vector<8x1xf32> to vector<8x32xf32>
    %26 = arith.mulf %21, %25 : vector<8x32xf32>
    %27 = vector.broadcast %6 : vector<1x32xf32> to vector<8x32xf32>
    %28 = arith.mulf %26, %27 : vector<8x32xf32>
    %29 = vector.broadcast %8 : vector<1x32xf32> to vector<8x32xf32>
    %30 = arith.addf %28, %29 : vector<8x32xf32>
    %c0_13 = arith.constant 0 : index
    %c0_14 = arith.constant 0 : index
    %c0_15 = arith.constant 0 : index
    %31 = vector.load %arg5[%c0_13, %c0_14, %c0_15] : memref<1x32x96xf32, #tpu.memory_space<vmem>>, vector<1x32x96xf32>
    %32 = vector.shape_cast %31 : vector<1x32x96xf32> to vector<32x96xf32>
    %cst_16 = arith.constant dense<0.000000e+00> : vector<8x96xf32>
    %33 = tpu.matmul %30, %32, %cst_16 {dimension_numbers = #tpu.dot_dimension_numbers<[1], [0], [0], [1], [0, 0, 1, 1], [], []>} : vector<8x32xf32>, vector<32x96xf32>, vector<8x96xf32> -> vector<8x96xf32>
    %c0_17 = arith.constant 0 : index
    %c0_18 = arith.constant 0 : index
    %c0_19 = arith.constant 0 : index
    %34 = vector.load %arg6[%c0_17, %c0_18, %c0_19] : memref<1x1x96xf32, #tpu.memory_space<vmem>>, vector<1x1x96xf32>
    %35 = vector.shape_cast %34 : vector<1x1x96xf32> to vector<1x96xf32>
    %36 = vector.broadcast %35 : vector<1x96xf32> to vector<8x96xf32>
    %37 = arith.addf %33, %36 : vector<8x96xf32>
    %38 = vector.extract_strided_slice %37 {offsets = [0, 0], sizes = [8, 32], strides = [1, 1]} : vector<8x96xf32> to vector<8x32xf32>
    %39 = vector.extract_strided_slice %37 {offsets = [0, 32], sizes = [8, 32], strides = [1, 1]} : vector<8x96xf32> to vector<8x32xf32>
    %40 = vector.extract_strided_slice %37 {offsets = [0, 64], sizes = [8, 32], strides = [1, 1]} : vector<8x96xf32> to vector<8x32xf32>
    %41 = vector.extract_strided_slice %38 {offsets = [0, 0], sizes = [8, 8], strides = [1, 1]} : vector<8x32xf32> to vector<8x8xf32>
    %42 = vector.extract_strided_slice %39 {offsets = [0, 0], sizes = [8, 8], strides = [1, 1]} : vector<8x32xf32> to vector<8x8xf32>
    %43 = vector.extract_strided_slice %40 {offsets = [0, 0], sizes = [8, 8], strides = [1, 1]} : vector<8x32xf32> to vector<8x8xf32>
    %cst_20 = arith.constant dense<0.000000e+00> : vector<8x8xf32>
    %44 = tpu.matmul %41, %42, %cst_20 {dimension_numbers = #tpu.dot_dimension_numbers<[1], [1], [0], [0], [0, 0, 1, 0], [], []>} : vector<8x8xf32>, vector<8x8xf32>, vector<8x8xf32> -> vector<8x8xf32>
    %cst_21 = arith.constant dense<0xFF800000> : vector<8xf32>
    %45 = vector.multi_reduction <maximumf>, %44, %cst_21 [1] : vector<8x8xf32> to vector<8xf32>
    %46 = vector.shape_cast %45 : vector<8xf32> to vector<8x1xf32>
    %47 = vector.broadcast %46 : vector<8x1xf32> to vector<8x8xf32>
    %48 = arith.subf %44, %47 : vector<8x8xf32>
    %49 = math.exp %48 : vector<8x8xf32>
    %cst_22 = arith.constant dense<0.000000e+00> : vector<8xf32>
    %50 = vector.multi_reduction <add>, %49, %cst_22 [1] : vector<8x8xf32> to vector<8xf32>
    %51 = vector.shape_cast %50 : vector<8xf32> to vector<8x1xf32>
    %52 = tpu.reciprocal %51 {approx = true} : vector<8x1xf32> -> vector<8x1xf32>
    %53 = vector.broadcast %52 : vector<8x1xf32> to vector<8x8xf32>
    %54 = arith.mulf %49, %53 : vector<8x8xf32>
    %cst_23 = arith.constant dense<0.000000e+00> : vector<8x8xf32>
    %55 = tpu.matmul %54, %43, %cst_23 {dimension_numbers = #tpu.dot_dimension_numbers<[1], [0], [0], [1], [0, 0, 1, 1], [], []>} : vector<8x8xf32>, vector<8x8xf32>, vector<8x8xf32> -> vector<8x8xf32>
    %c0_24 = arith.constant 0 : index
    %c0_25 = arith.constant 0 : index
    %56 = vector.load %arg16[%c0_24, %c0_25] : memref<8x32xf32, #tpu.memory_space<vmem>>, vector<8x8xf32>
    tpu.vector_store %arg16[%c0_24, %c0_25], %55 {strides = array<i32>} : memref<8x32xf32, #tpu.memory_space<vmem>>, vector<8x8xf32>,
    %57 = vector.extract_strided_slice %38 {offsets = [0, 8], sizes = [8, 8], strides = [1, 1]} : vector<8x32xf32> to vector<8x8xf32>
    %58 = vector.extract_strided_slice %39 {offsets = [0, 8], sizes = [8, 8], strides = [1, 1]} : vector<8x32xf32> to vector<8x8xf32>
    %59 = vector.extract_strided_slice %40 {offsets = [0, 8], sizes = [8, 8], strides = [1, 1]} : vector<8x32xf32> to vector<8x8xf32>
    %cst_26 = arith.constant dense<0.000000e+00> : vector<8x8xf32>
    %60 = tpu.matmul %57, %58, %cst_26 {dimension_numbers = #tpu.dot_dimension_numbers<[1], [1], [0], [0], [0, 0, 1, 0], [], []>} : vector<8x8xf32>, vector<8x8xf32>, vector<8x8xf32> -> vector<8x8xf32>
    %cst_27 = arith.constant dense<0xFF800000> : vector<8xf32>
    %61 = vector.multi_reduction <maximumf>, %60, %cst_27 [1] : vector<8x8xf32> to vector<8xf32>
    %62 = vector.shape_cast %61 : vector<8xf32> to vector<8x1xf32>
    %63 = vector.broadcast %62 : vector<8x1xf32> to vector<8x8xf32>
    %64 = arith.subf %60, %63 : vector<8x8xf32>
    %65 = math.exp %64 : vector<8x8xf32>
    %cst_28 = arith.constant dense<0.000000e+00> : vector<8xf32>
    %66 = vector.multi_reduction <add>, %65, %cst_28 [1] : vector<8x8xf32> to vector<8xf32>
    %67 = vector.shape_cast %66 : vector<8xf32> to vector<8x1xf32>
    %68 = tpu.reciprocal %67 {approx = true} : vector<8x1xf32> -> vector<8x1xf32>
    %69 = vector.broadcast %68 : vector<8x1xf32> to vector<8x8xf32>
    %70 = arith.mulf %65, %69 : vector<8x8xf32>
    %cst_29 = arith.constant dense<0.000000e+00> : vector<8x8xf32>
    %71 = tpu.matmul %70, %59, %cst_29 {dimension_numbers = #tpu.dot_dimension_numbers<[1], [0], [0], [1], [0, 0, 1, 1], [], []>} : vector<8x8xf32>, vector<8x8xf32>, vector<8x8xf32> -> vector<8x8xf32>
    %c0_30 = arith.constant 0 : index
    %c8 = arith.constant 8 : index
    %72 = vector.load %arg16[%c0_30, %c8] : memref<8x32xf32, #tpu.memory_space<vmem>>, vector<8x8xf32>
    tpu.vector_store %arg16[%c0_30, %c8], %71 {strides = array<i32>} : memref<8x32xf32, #tpu.memory_space<vmem>>, vector<8x8xf32>,
    %73 = vector.extract_strided_slice %38 {offsets = [0, 16], sizes = [8, 8], strides = [1, 1]} : vector<8x32xf32> to vector<8x8xf32>
    %74 = vector.extract_strided_slice %39 {offsets = [0, 16], sizes = [8, 8], strides = [1, 1]} : vector<8x32xf32> to vector<8x8xf32>
    %75 = vector.extract_strided_slice %40 {offsets = [0, 16], sizes = [8, 8], strides = [1, 1]} : vector<8x32xf32> to vector<8x8xf32>
    %cst_31 = arith.constant dense<0.000000e+00> : vector<8x8xf32>
    %76 = tpu.matmul %73, %74, %cst_31 {dimension_numbers = #tpu.dot_dimension_numbers<[1], [1], [0], [0], [0, 0, 1, 0], [], []>} : vector<8x8xf32>, vector<8x8xf32>, vector<8x8xf32> -> vector<8x8xf32>
    %cst_32 = arith.constant dense<0xFF800000> : vector<8xf32>
    %77 = vector.multi_reduction <maximumf>, %76, %cst_32 [1] : vector<8x8xf32> to vector<8xf32>
    %78 = vector.shape_cast %77 : vector<8xf32> to vector<8x1xf32>
    %79 = vector.broadcast %78 : vector<8x1xf32> to vector<8x8xf32>
    %80 = arith.subf %76, %79 : vector<8x8xf32>
    %81 = math.exp %80 : vector<8x8xf32>
    %cst_33 = arith.constant dense<0.000000e+00> : vector<8xf32>
    %82 = vector.multi_reduction <add>, %81, %cst_33 [1] : vector<8x8xf32> to vector<8xf32>
    %83 = vector.shape_cast %82 : vector<8xf32> to vector<8x1xf32>
    %84 = tpu.reciprocal %83 {approx = true} : vector<8x1xf32> -> vector<8x1xf32>
    %85 = vector.broadcast %84 : vector<8x1xf32> to vector<8x8xf32>
    %86 = arith.mulf %81, %85 : vector<8x8xf32>
    %cst_34 = arith.constant dense<0.000000e+00> : vector<8x8xf32>
    %87 = tpu.matmul %86, %75, %cst_34 {dimension_numbers = #tpu.dot_dimension_numbers<[1], [0], [0], [1], [0, 0, 1, 1], [], []>} : vector<8x8xf32>, vector<8x8xf32>, vector<8x8xf32> -> vector<8x8xf32>
    %c0_35 = arith.constant 0 : index
    %c16 = arith.constant 16 : index
    %88 = vector.load %arg16[%c0_35, %c16] : memref<8x32xf32, #tpu.memory_space<vmem>>, vector<8x8xf32>
    tpu.vector_store %arg16[%c0_35, %c16], %87 {strides = array<i32>} : memref<8x32xf32, #tpu.memory_space<vmem>>, vector<8x8xf32>,
    %89 = vector.extract_strided_slice %38 {offsets = [0, 24], sizes = [8, 8], strides = [1, 1]} : vector<8x32xf32> to vector<8x8xf32>
    %90 = vector.extract_strided_slice %39 {offsets = [0, 24], sizes = [8, 8], strides = [1, 1]} : vector<8x32xf32> to vector<8x8xf32>
    %91 = vector.extract_strided_slice %40 {offsets = [0, 24], sizes = [8, 8], strides = [1, 1]} : vector<8x32xf32> to vector<8x8xf32>
    %cst_36 = arith.constant dense<0.000000e+00> : vector<8x8xf32>
    %92 = tpu.matmul %89, %90, %cst_36 {dimension_numbers = #tpu.dot_dimension_numbers<[1], [1], [0], [0], [0, 0, 1, 0], [], []>} : vector<8x8xf32>, vector<8x8xf32>, vector<8x8xf32> -> vector<8x8xf32>
    %cst_37 = arith.constant dense<0xFF800000> : vector<8xf32>
    %93 = vector.multi_reduction <maximumf>, %92, %cst_37 [1] : vector<8x8xf32> to vector<8xf32>
    %94 = vector.shape_cast %93 : vector<8xf32> to vector<8x1xf32>
    %95 = vector.broadcast %94 : vector<8x1xf32> to vector<8x8xf32>
    %96 = arith.subf %92, %95 : vector<8x8xf32>
    %97 = math.exp %96 : vector<8x8xf32>
    %cst_38 = arith.constant dense<0.000000e+00> : vector<8xf32>
    %98 = vector.multi_reduction <add>, %97, %cst_38 [1] : vector<8x8xf32> to vector<8xf32>
    %99 = vector.shape_cast %98 : vector<8xf32> to vector<8x1xf32>
    %100 = tpu.reciprocal %99 {approx = true} : vector<8x1xf32> -> vector<8x1xf32>
    %101 = vector.broadcast %100 : vector<8x1xf32> to vector<8x8xf32>
    %102 = arith.mulf %97, %101 : vector<8x8xf32>
    %cst_39 = arith.constant dense<0.000000e+00> : vector<8x8xf32>
    %103 = tpu.matmul %102, %91, %cst_39 {dimension_numbers = #tpu.dot_dimension_numbers<[1], [0], [0], [1], [0, 0, 1, 1], [], []>} : vector<8x8xf32>, vector<8x8xf32>, vector<8x8xf32> -> vector<8x8xf32>
    %c0_40 = arith.constant 0 : index
    %c24 = arith.constant 24 : index
    %104 = vector.load %arg16[%c0_40, %c24] : memref<8x32xf32, #tpu.memory_space<vmem>>, vector<8x8xf32>
    tpu.vector_store %arg16[%c0_40, %c24], %103 {strides = array<i32>} : memref<8x32xf32, #tpu.memory_space<vmem>>, vector<8x8xf32>,
    %c0_41 = arith.constant 0 : index
    %c0_42 = arith.constant 0 : index
    %105 = vector.load %arg16[%c0_41, %c0_42] : memref<8x32xf32, #tpu.memory_space<vmem>>, vector<8x32xf32>
    %c0_43 = arith.constant 0 : index
    %c0_44 = arith.constant 0 : index
    %c0_45 = arith.constant 0 : index
    %106 = vector.load %arg7[%c0_43, %c0_44, %c0_45] : memref<1x32x32xf32, #tpu.memory_space<vmem>>, vector<1x32x32xf32>
    %107 = vector.shape_cast %106 : vector<1x32x32xf32> to vector<32x32xf32>
    %cst_46 = arith.constant dense<0.000000e+00> : vector<8x32xf32>
    %108 = tpu.matmul %105, %107, %cst_46 {dimension_numbers = #tpu.dot_dimension_numbers<[1], [0], [0], [1], [0, 0, 1, 1], [], []>} : vector<8x32xf32>, vector<32x32xf32>, vector<8x32xf32> -> vector<8x32xf32>
    %c0_47 = arith.constant 0 : index
    %c0_48 = arith.constant 0 : index
    %c0_49 = arith.constant 0 : index
    %109 = vector.load %arg8[%c0_47, %c0_48, %c0_49] : memref<1x1x32xf32, #tpu.memory_space<vmem>>, vector<1x1x32xf32>
    %110 = vector.shape_cast %109 : vector<1x1x32xf32> to vector<1x32xf32>
    %111 = vector.broadcast %110 : vector<1x32xf32> to vector<8x32xf32>
    %112 = arith.addf %108, %111 : vector<8x32xf32>
    %113 = arith.addf %4, %112 : vector<8x32xf32>
    %c0_50 = arith.constant 0 : index
    %c0_51 = arith.constant 0 : index
    %c0_52 = arith.constant 0 : index
    %114 = vector.load %arg9[%c0_50, %c0_51, %c0_52] : memref<1x1x32xf32, #tpu.memory_space<vmem>>, vector<1x1x32xf32>
    %115 = vector.shape_cast %114 : vector<1x1x32xf32> to vector<1x32xf32>
    %c0_53 = arith.constant 0 : index
    %c0_54 = arith.constant 0 : index
    %c0_55 = arith.constant 0 : index
    %116 = vector.load %arg10[%c0_53, %c0_54, %c0_55] : memref<1x1x32xf32, #tpu.memory_space<vmem>>, vector<1x1x32xf32>
    %117 = vector.shape_cast %116 : vector<1x1x32xf32> to vector<1x32xf32>
    %cst_56 = arith.constant dense<0.000000e+00> : vector<8xf32>
    %118 = vector.multi_reduction <add>, %113, %cst_56 [1] : vector<8x32xf32> to vector<8xf32>
    %119 = vector.shape_cast %118 : vector<8xf32> to vector<8x1xf32>
    %cst_57 = arith.constant 3.200000e+01 : f32
    %120 = vector.broadcast %cst_57 : f32 to vector<8x1xf32>
    %121 = arith.divf %119, %120 : vector<8x1xf32>
    %122 = vector.broadcast %121 : vector<8x1xf32> to vector<8x32xf32>
    %123 = arith.subf %113, %122 : vector<8x32xf32>
    %124 = arith.mulf %123, %123 : vector<8x32xf32>
    %cst_58 = arith.constant dense<0.000000e+00> : vector<8xf32>
    %125 = vector.multi_reduction <add>, %124, %cst_58 [1] : vector<8x32xf32> to vector<8xf32>
    %126 = vector.shape_cast %125 : vector<8xf32> to vector<8x1xf32>
    %cst_59 = arith.constant 3.200000e+01 : f32
    %127 = vector.broadcast %cst_59 : f32 to vector<8x1xf32>
    %128 = arith.divf %126, %127 : vector<8x1xf32>
    %129 = vector.broadcast %121 : vector<8x1xf32> to vector<8x32xf32>
    %130 = arith.subf %113, %129 : vector<8x32xf32>
    %cst_60 = arith.constant 9.99999993E-9 : f32
    %131 = vector.broadcast %cst_60 : f32 to vector<8x1xf32>
    %132 = arith.addf %128, %131 : vector<8x1xf32>
    %133 = math.rsqrt %132 : vector<8x1xf32>
    %134 = vector.broadcast %133 : vector<8x1xf32> to vector<8x32xf32>
    %135 = arith.mulf %130, %134 : vector<8x32xf32>
    %136 = vector.broadcast %115 : vector<1x32xf32> to vector<8x32xf32>
    %137 = arith.mulf %135, %136 : vector<8x32xf32>
    %138 = vector.broadcast %117 : vector<1x32xf32> to vector<8x32xf32>
    %139 = arith.addf %137, %138 : vector<8x32xf32>
    %c0_61 = arith.constant 0 : index
    %c0_62 = arith.constant 0 : index
    %c0_63 = arith.constant 0 : index
    %140 = vector.load %arg11[%c0_61, %c0_62, %c0_63] : memref<1x32x64xf32, #tpu.memory_space<vmem>>, vector<1x32x64xf32>
    %141 = vector.shape_cast %140 : vector<1x32x64xf32> to vector<32x64xf32>
    %cst_64 = arith.constant dense<0.000000e+00> : vector<8x64xf32>
    %142 = tpu.matmul %139, %141, %cst_64 {dimension_numbers = #tpu.dot_dimension_numbers<[1], [0], [0], [1], [0, 0, 1, 1], [], []>} : vector<8x32xf32>, vector<32x64xf32>, vector<8x64xf32> -> vector<8x64xf32>
    %c0_65 = arith.constant 0 : index
    %c0_66 = arith.constant 0 : index
    %c0_67 = arith.constant 0 : index
    %143 = vector.load %arg12[%c0_65, %c0_66, %c0_67] : memref<1x1x64xf32, #tpu.memory_space<vmem>>, vector<1x1x64xf32>
    %144 = vector.shape_cast %143 : vector<1x1x64xf32> to vector<1x64xf32>
    %145 = vector.broadcast %144 : vector<1x64xf32> to vector<8x64xf32>
    %146 = arith.addf %142, %145 : vector<8x64xf32>
    %cst_68 = arith.constant 0.000000e+00 : f32
    %147 = vector.broadcast %cst_68 : f32 to vector<8x64xf32>
    %148 = arith.maximumf %146, %147 : vector<8x64xf32>
    %c0_69 = arith.constant 0 : index
    %c0_70 = arith.constant 0 : index
    %c0_71 = arith.constant 0 : index
    %149 = vector.load %arg13[%c0_69, %c0_70, %c0_71] : memref<1x64x32xf32, #tpu.memory_space<vmem>>, vector<1x64x32xf32>
    %150 = vector.shape_cast %149 : vector<1x64x32xf32> to vector<64x32xf32>
    %cst_72 = arith.constant dense<0.000000e+00> : vector<8x32xf32>
    %151 = tpu.matmul %148, %150, %cst_72 {dimension_numbers = #tpu.dot_dimension_numbers<[1], [0], [0], [1], [0, 0, 1, 1], [], []>} : vector<8x64xf32>, vector<64x32xf32>, vector<8x32xf32> -> vector<8x32xf32>
    %c0_73 = arith.constant 0 : index
    %c0_74 = arith.constant 0 : index
    %c0_75 = arith.constant 0 : index
    %152 = vector.load %arg14[%c0_73, %c0_74, %c0_75] : memref<1x1x32xf32, #tpu.memory_space<vmem>>, vector<1x1x32xf32>
    %153 = vector.shape_cast %152 : vector<1x1x32xf32> to vector<1x32xf32>
    %154 = vector.broadcast %153 : vector<1x32xf32> to vector<8x32xf32>
    %155 = arith.addf %151, %154 : vector<8x32xf32>
    %156 = arith.addf %113, %155 : vector<8x32xf32>
    %c0_76 = arith.constant 0 : index
    %c0_77 = arith.constant 0 : index
    %c0_78 = arith.constant 0 : index
    %157 = vector.load %arg15[%c0_76, %c0_77, %c0_78] : memref<1x8x32xf32, #tpu.memory_space<vmem>>, vector<1x8x32xf32>
    %158 = vector.shape_cast %157 : vector<1x8x32xf32> to vector<8x32xf32>
    %159 = vector.shape_cast %156 : vector<8x32xf32> to vector<1x8x32xf32>
    tpu.vector_store %arg15[%c0_76, %c0_77, %c0_78], %159 {strides = array<i32>} : memref<1x8x32xf32, #tpu.memory_space<vmem>>, vector<1x8x32xf32>,
    return
  }
  func.func @transform_0(%arg0: i32, %arg1: i32) -> (i32, i32, i32) {
    %c0_i32 = arith.constant 0 : i32
    %c0_i32_0 = arith.constant 0 : i32
    %c0_i32_1 = arith.constant 0 : i32
    return %arg0, %c0_i32, %c0_i32_0 : i32, i32, i32
  }
  func.func @transform_1(%arg0: i32, %arg1: i32) -> (i32, i32, i32) {
    %c0_i32 = arith.constant 0 : i32
    %c0_i32_0 = arith.constant 0 : i32
    %c0_i32_1 = arith.constant 0 : i32
    return %arg1, %c0_i32, %c0_i32_0 : i32, i32, i32
  }
  func.func @transform_2(%arg0: i32, %arg1: i32) -> (i32, i32, i32) {
    %c0_i32 = arith.constant 0 : i32
    %c0_i32_0 = arith.constant 0 : i32
    %c0_i32_1 = arith.constant 0 : i32
    return %arg1, %c0_i32, %c0_i32_0 : i32, i32, i32
  }
  func.func @transform_3(%arg0: i32, %arg1: i32) -> (i32, i32, i32) {
    %c0_i32 = arith.constant 0 : i32
    %c0_i32_0 = arith.constant 0 : i32
    %c0_i32_1 = arith.constant 0 : i32
    return %arg1, %c0_i32, %c0_i32_0 : i32, i32, i32
  }
  func.func @transform_4(%arg0: i32, %arg1: i32) -> (i32, i32, i32) {
    %c0_i32 = arith.constant 0 : i32
    %c0_i32_0 = arith.constant 0 : i32
    %c0_i32_1 = arith.constant 0 : i32
    return %arg1, %c0_i32, %c0_i32_0 : i32, i32, i32
  }
  func.func @transform_5(%arg0: i32, %arg1: i32) -> (i32, i32, i32) {
    %c0_i32 = arith.constant 0 : i32
    %c0_i32_0 = arith.constant 0 : i32
    %c0_i32_1 = arith.constant 0 : i32
    return %arg1, %c0_i32, %c0_i32_0 : i32, i32, i32
  }
  func.func @transform_6(%arg0: i32, %arg1: i32) -> (i32, i32, i32) {
    %c0_i32 = arith.constant 0 : i32
    %c0_i32_0 = arith.constant 0 : i32
    %c0_i32_1 = arith.constant 0 : i32
    return %arg1, %c0_i32, %c0_i32_0 : i32, i32, i32
  }
  func.func @transform_7(%arg0: i32, %arg1: i32) -> (i32, i32, i32) {
    %c0_i32 = arith.constant 0 : i32
    %c0_i32_0 = arith.constant 0 : i32
    %c0_i32_1 = arith.constant 0 : i32
    return %arg1, %c0_i32, %c0_i32_0 : i32, i32, i32
  }
  func.func @transform_8(%arg0: i32, %arg1: i32) -> (i32, i32, i32) {
    %c0_i32 = arith.constant 0 : i32
    %c0_i32_0 = arith.constant 0 : i32
    %c0_i32_1 = arith.constant 0 : i32
    return %arg1, %c0_i32, %c0_i32_0 : i32, i32, i32
  }
  func.func @transform_9(%arg0: i32, %arg1: i32) -> (i32, i32, i32) {
    %c0_i32 = arith.constant 0 : i32
    %c0_i32_0 = arith.constant 0 : i32
    %c0_i32_1 = arith.constant 0 : i32
    return %arg1, %c0_i32, %c0_i32_0 : i32, i32, i32
  }
  func.func @transform_10(%arg0: i32, %arg1: i32) -> (i32, i32, i32) {
    %c0_i32 = arith.constant 0 : i32
    %c0_i32_0 = arith.constant 0 : i32
    %c0_i32_1 = arith.constant 0 : i32
    return %arg1, %c0_i32, %c0_i32_0 : i32, i32, i32
  }
  func.func @transform_11(%arg0: i32, %arg1: i32) -> (i32, i32, i32) {
    %c0_i32 = arith.constant 0 : i32
    %c0_i32_0 = arith.constant 0 : i32
    %c0_i32_1 = arith.constant 0 : i32
    return %arg1, %c0_i32, %c0_i32_0 : i32, i32, i32
  }
  func.func @transform_12(%arg0: i32, %arg1: i32) -> (i32, i32, i32) {
    %c0_i32 = arith.constant 0 : i32
    %c0_i32_0 = arith.constant 0 : i32
    %c0_i32_1 = arith.constant 0 : i32
    return %arg1, %c0_i32, %c0_i32_0 : i32, i32, i32
  }
  func.func @transform_13(%arg0: i32, %arg1: i32) -> (i32, i32, i32) {
    %c0_i32 = arith.constant 0 : i32
    %c0_i32_0 = arith.constant 0 : i32
    %c0_i32_1 = arith.constant 0 : i32
    return %arg0, %c0_i32, %c0_i32_0 : i32, i32, i32
  }
}

</mosaic_0001>

<llo_original>
// kernel: tpu_custom_call.1
$region0: #{tpu_custom_call.1}
  #allocation0 [shape = 'u32[]', space=smem, size = 0x4, offset = 0x4, fixed_abs, tag = 'smem constant byte address 0x4 - core index']
  #allocation1 [shape = 'u32[72,128]{1,0:T(1,128)}', space=vmem, size = 0x9000, scoped, tag = 'internal scratch']
  #allocation2 [shape = 'f32[8,32]{1,0:T(8,128)}', space=vmem, size = 0x1000, scoped, tag = 'scratch operand']
  %s0 = inlined_call_operand.hbm [shape: f32[2,8,32], index: 0, kind: input, shape index: {}]
  %s1 = inlined_call_operand.hbm [shape: f32[3,1,32], index: 1, kind: input, shape index: {}]
  %s2 = inlined_call_operand.hbm [shape: f32[3,1,32], index: 2, kind: input, shape index: {}]
  %s3 = inlined_call_operand.vmem [shape: f32[3,32,96], index: 3, kind: input, shape index: {}]
  %s4 = inlined_call_operand.vmem [shape: f32[3,1,96], index: 4, kind: input, shape index: {}]
  %s5 = inlined_call_operand.vmem [shape: f32[3,32,32], index: 5, kind: input, shape index: {}]
  %s6 = inlined_call_operand.hbm [shape: f32[3,1,32], index: 6, kind: input, shape index: {}]
  %s7 = inlined_call_operand.hbm [shape: f32[3,1,32], index: 7, kind: input, shape index: {}]
  %s8 = inlined_call_operand.vmem [shape: f32[3,1,32], index: 8, kind: input, shape index: {}]
  %s9 = inlined_call_operand.vmem [shape: f32[3,32,64], index: 9, kind: input, shape index: {}]
  %s10 = inlined_call_operand.hbm [shape: f32[3,1,64], index: 10, kind: input, shape index: {}]
  %s11 = inlined_call_operand.vmem [shape: f32[3,64,32], index: 11, kind: input, shape index: {}]
  %s12 = inlined_call_operand.vmem [shape: f32[3,1,32], index: 12, kind: input, shape index: {}]
  %s13 = inlined_call_operand.hbm [shape: f32[2,8,32], index: 13, kind: output, shape index: {}]
  %s14 = sld [smem:[#allocation0]]
  $region113: #{tpu_custom_call.1} parent=0
    _
  %s16 = ssub.s32 1, %s14
  %s17 = scalar_select 0, %s16, %s14
  $region1: #{tpu_custom_call.1} parent=0
    #allocation3 [shape = 'u8[8192]{0}', space=vmem, size = 0x2000, scoped, tag = 'input window, operand 0']
    #allocation4 [shape = 's32[2]{0}', space=sflag, size = 0x8, scoped, tag = 'scoped memory for tpu_custom_call.1']
    #allocation5 [shape = 's32[2]{0}', space=sflag, size = 0x8, scoped, tag = 'scoped memory for tpu_custom_call.1']
    #allocation6 [shape = 'u8[1024]{0}', space=vmem, size = 0x400, scoped, tag = 'input window, operand 1']
    #allocation7 [shape = 's32[2]{0}', space=sflag, size = 0x8, scoped, tag = 'scoped memory for tpu_custom_call.1']
    #allocation8 [shape = 'u8[1024]{0}', space=vmem, size = 0x400, scoped, tag = 'input window, operand 2']
    #allocation9 [shape = 'u8[1024]{0}', space=vmem, size = 0x400, scoped, tag = 'input window, operand 6']
    #allocation10 [shape = 's32[2]{0}', space=sflag, size = 0x8, scoped, tag = 'scoped memory for tpu_custom_call.1']
    #allocation11 [shape = 'u8[1024]{0}', space=vmem, size = 0x400, scoped, tag = 'input window, operand 7']
    #allocation12 [shape = 'u8[1024]{0}', space=vmem, size = 0x400, scoped, tag = 'input window, operand 10']
    #allocation13 [shape = 's32[2]{0}', space=sflag, size = 0x8, scoped, tag = 'scoped memory for tpu_custom_call.1']
    #allocation14 [shape = 'u8[8192]{0}', space=vmem, size = 0x2000, scoped, tag = 'output window, operand 0']
    %18 = vsyncpa [#allocation4], 0
    %s19 = scalar_lea.sflag [#allocation4], 1
    %20 = vsyncpa %s19, 0
    %21 = vsyncpa [#allocation7], 0
    %s22 = scalar_lea.sflag [#allocation7], 1
    %23 = vsyncpa %s22, 0
    %24 = vsyncpa [#allocation10], 0
    %s25 = scalar_lea.sflag [#allocation10], 1
    %26 = vsyncpa %s25, 0
    %27 = vsyncpa [#allocation13], 0
    %s28 = scalar_lea.sflag [#allocation13], 1
    %29 = vsyncpa %s28, 0
    %30 = vsyncpa [#allocation5], 0
    %s31 = scalar_lea.sflag [#allocation5], 1
    %32 = vsyncpa %s31, 0
    loop: start=0, step=1, limit=8
    $region2: #{tpu_custom_call.1} parent=1 // loop_pre_header
      _
    $region3: #{tpu_custom_call.1} parent=1 // loop_header
      %s34 = sphi 0, %s38
      %p35 = scmp.ge.s32.totalorder %s34, 8
      %s41 = sphi 0, %s53
      %s42 = sphi 0, %s49
      %s43 = sphi 0, %s41
      %s44 = sphi 0, %s42
      %s45 = sphi 0, %s43
      %s46 = sphi 0, %s44
      %s56 = sphi 0, %s58
      %s59 = sphi 0, %s56
      %s60 = sphi 0, %s59
      %s76 = sphi 0, %s60
      %s82 = sphi 0, %s84
      %s85 = sphi 0, %s82
      %s86 = sphi 0, %s85
      %s102 = sphi 0, %s86
      %s108 = sphi 0, %s110
      %s111 = sphi 0, %s108
      %s112 = sphi 0, %s111
      %s128 = sphi 0, %s112
      %s134 = sphi 0, %s136
      %s137 = sphi 0, %s134
      %s138 = sphi 0, %s137
      %s154 = sphi 0, %s138
      %s160 = sphi 0, %s162
      %s163 = sphi 0, %s160
      %s164 = sphi 0, %s163
      %s180 = sphi 0, %s164
      %s186 = sphi 0, %s188
      %s189 = sphi 0, %s186
      %s190 = sphi 0, %s189
      %s206 = sphi 0, %s190
      %s212 = sphi 0, %s214
      %s215 = sphi 0, %s212
      %s216 = sphi 0, %s215
      %s232 = sphi 0, %s216
      %s238 = sphi 0, %s240
      %s241 = sphi 0, %s238
      %s242 = sphi 0, %s241
      %s258 = sphi 0, %s242
      %s264 = sphi 0, %s266
      %s267 = sphi 0, %s264
      %s268 = sphi 0, %s267
      %s284 = sphi 0, %s268
      %s290 = sphi 0, %s292
      %s293 = sphi 0, %s290
      %s294 = sphi 0, %s293
      %s310 = sphi 0, %s294
      %s316 = sphi 0, %s318
      %s319 = sphi 0, %s316
      %s320 = sphi 0, %s319
      %s336 = sphi 0, %s320
      %s342 = sphi 0, %s344
      %s345 = sphi 0, %s342
      %s346 = sphi 0, %s345
      %s362 = sphi 0, %s346
      %s368 = sphi 0, %s370
      %s371 = sphi 0, %s368
      %s372 = sphi 0, %s371
      %s388 = sphi 0, %s372
      %s394 = sphi 0, %s396
      %s397 = sphi 0, %s394
      %s398 = sphi 0, %s397
      %s414 = sphi 0, %s398
    $region4: #{tpu_custom_call.1} parent=1 // loop_header_branch
      %37 = sbr.rel (%p35) target = $region8
    $region5: #{tpu_custom_call.1} parent=1 // loop_body
      %s39 = ssub.s32 %s34, 1
      %s40 = ssub.s32 %s34, 2
      %s47 = sadd.s32 1, %s42
      %p48 = scmp.ge.s32.totalorder %s47, 3
      %s49 = scalar_select %p48, 0, %s47
      %s50 = sadd.s32 1, %s41
      %s51 = scalar_select %p48, %s50, %s41
      %p52 = scmp.ge.s32.totalorder %s51, 2
      %s53 = scalar_select %p52, 0, %s51
      %s54 = ssub.s32 %s41, %s53
      %p55 = scmp.eq.s32.totalorder %s54, 0
      %s57 = sadd.s32 %s56, 1
      %s58 = scalar_select %p55, %s56, %s57
      %p61 = pneg %p55
      %p62 = scmp.eq.s32.totalorder %s34, 5
      %p63 = por %p61, %p62
      %p64 = scmp.ne.s32.totalorder %s56, %s59
      %p65 = scmp.eq.s32.totalorder %s34, 0
      %p66 = por %p64, %p65
      %p67 = scmp.ne.s32.totalorder %s56, %s59
      %p68 = scmp.eq.s32.totalorder %s39, 5
      %p69 = por %p67, %p68
      %p70 = scmp.ne.s32.totalorder %s59, %s60
      %p71 = scmp.eq.s32.totalorder %s39, 0
      %p72 = por %p70, %p71
      %p73 = scmp.ne.s32.totalorder %s59, %s60
      %p74 = scmp.eq.s32.totalorder %s40, 5
      %p75 = por %p73, %p74
      %p77 = scmp.ne.s32.totalorder %s60, %s76
      %p78 = scmp.eq.s32.totalorder %s40, 0
      %p79 = por %p77, %p78
      %s80 = ssub.s32 %s42, %s49
      %p81 = scmp.eq.s32.totalorder %s80, 0
      %s83 = sadd.s32 %s82, 1
      %s84 = scalar_select %p81, %s82, %s83
      %p87 = pneg %p81
      %p88 = scmp.eq.s32.totalorder %s34, 5
      %p89 = por %p87, %p88
      %p90 = scmp.ne.s32.totalorder %s82, %s85
      %p91 = scmp.eq.s32.totalorder %s34, 0
      %p92 = por %p90, %p91
      %p93 = scmp.ne.s32.totalorder %s82, %s85
      %p94 = scmp.eq.s32.totalorder %s39, 5
      %p95 = por %p93, %p94
      %p96 = scmp.ne.s32.totalorder %s85, %s86
      %p97 = scmp.eq.s32.totalorder %s39, 0
      %p98 = por %p96, %p97
      %p99 = scmp.ne.s32.totalorder %s85, %s86
      %p100 = scmp.eq.s32.totalorder %s40, 5
      %p101 = por %p99, %p100
      %p103 = scmp.ne.s32.totalorder %s86, %s102
      %p104 = scmp.eq.s32.totalorder %s40, 0
      %p105 = por %p103, %p104
      %s106 = ssub.s32 %s42, %s49
      %p107 = scmp.eq.s32.totalorder %s106, 0
      %s109 = sadd.s32 %s108, 1
      %s110 = scalar_select %p107, %s108, %s109
      %p113 = pneg %p107
      %p114 = scmp.eq.s32.totalorder %s34, 5
      %p115 = por %p113, %p114
      %p116 = scmp.ne.s32.totalorder %s108, %s111
      %p117 = scmp.eq.s32.totalorder %s34, 0
      %p118 = por %p116, %p117
      %p119 = scmp.ne.s32.totalorder %s108, %s111
      %p120 = scmp.eq.s32.totalorder %s39, 5
      %p121 = por %p119, %p120
      %p122 = scmp.ne.s32.totalorder %s111, %s112
      %p123 = scmp.eq.s32.totalorder %s39, 0
      %p124 = por %p122, %p123
      %p125 = scmp.ne.s32.totalorder %s111, %s112
      %p126 = scmp.eq.s32.totalorder %s40, 5
      %p127 = por %p125, %p126
      %p129 = scmp.ne.s32.totalorder %s112, %s128
      %p130 = scmp.eq.s32.totalorder %s40, 0
      %p131 = por %p129, %p130
      %s132 = ssub.s32 %s42, %s49
      %p133 = scmp.eq.s32.totalorder %s132, 0
      %s135 = sadd.s32 %s134, 1
      %s136 = scalar_select %p133, %s134, %s135
      %p139 = pneg %p133
      %p140 = scmp.eq.s32.totalorder %s34, 5
      %p141 = por %p139, %p140
      %p142 = scmp.ne.s32.totalorder %s134, %s137
      %p143 = scmp.eq.s32.totalorder %s34, 0
      %p144 = por %p142, %p143
      %p145 = scmp.ne.s32.totalorder %s134, %s137
      %p146 = scmp.eq.s32.totalorder %s39, 5
      %p147 = por %p145, %p146
      %p148 = scmp.ne.s32.totalorder %s137, %s138
      %p149 = scmp.eq.s32.totalorder %s39, 0
      %p150 = por %p148, %p149
      %p151 = scmp.ne.s32.totalorder %s137, %s138
      %p152 = scmp.eq.s32.totalorder %s40, 5
      %p153 = por %p151, %p152
      %p155 = scmp.ne.s32.totalorder %s138, %s154
      %p156 = scmp.eq.s32.totalorder %s40, 0
      %p157 = por %p155, %p156
      %s158 = ssub.s32 %s42, %s49
      %p159 = scmp.eq.s32.totalorder %s158, 0
      %s161 = sadd.s32 %s160, 1
      %s162 = scalar_select %p159, %s160, %s161
      %p165 = pneg %p159
      %p166 = scmp.eq.s32.totalorder %s34, 5
      %p167 = por %p165, %p166
      %p168 = scmp.ne.s32.totalorder %s160, %s163
      %p169 = scmp.eq.s32.totalorder %s34, 0
      %p170 = por %p168, %p169
      %p171 = scmp.ne.s32.totalorder %s160, %s163
      %p172 = scmp.eq.s32.totalorder %s39, 5
      %p173 = por %p171, %p172
      %p174 = scmp.ne.s32.totalorder %s163, %s164
      %p175 = scmp.eq.s32.totalorder %s39, 0
      %p176 = por %p174, %p175
      %p177 = scmp.ne.s32.totalorder %s163, %s164
      %p178 = scmp.eq.s32.totalorder %s40, 5
      %p179 = por %p177, %p178
      %p181 = scmp.ne.s32.totalorder %s164, %s180
      %p182 = scmp.eq.s32.totalorder %s40, 0
      %p183 = por %p181, %p182
      %s184 = ssub.s32 %s42, %s49
      %p185 = scmp.eq.s32.totalorder %s184, 0
      %s187 = sadd.s32 %s186, 1
      %s188 = scalar_select %p185, %s186, %s187
      %p191 = pneg %p185
      %p192 = scmp.eq.s32.totalorder %s34, 5
      %p193 = por %p191, %p192
      %p194 = scmp.ne.s32.totalorder %s186, %s189
      %p195 = scmp.eq.s32.totalorder %s34, 0
      %p196 = por %p194, %p195
      %p197 = scmp.ne.s32.totalorder %s186, %s189
      %p198 = scmp.eq.s32.totalorder %s39, 5
      %p199 = por %p197, %p198
      %p200 = scmp.ne.s32.totalorder %s189, %s190
      %p201 = scmp.eq.s32.totalorder %s39, 0
      %p202 = por %p200, %p201
      %p203 = scmp.ne.s32.totalorder %s189, %s190
      %p204 = scmp.eq.s32.totalorder %s40, 5
      %p205 = por %p203, %p204
      %p207 = scmp.ne.s32.totalorder %s190, %s206
      %p208 = scmp.eq.s32.totalorder %s40, 0
      %p209 = por %p207, %p208
      %s210 = ssub.s32 %s42, %s49
      %p211 = scmp.eq.s32.totalorder %s210, 0
      %s213 = sadd.s32 %s212, 1
      %s214 = scalar_select %p211, %s212, %s213
      %p217 = pneg %p211
      %p218 = scmp.eq.s32.totalorder %s34, 5
      %p219 = por %p217, %p218
      %p220 = scmp.ne.s32.totalorder %s212, %s215
      %p221 = scmp.eq.s32.totalorder %s34, 0
      %p222 = por %p220, %p221
      %p223 = scmp.ne.s32.totalorder %s212, %s215
      %p224 = scmp.eq.s32.totalorder %s39, 5
      %p225 = por %p223, %p224
      %p226 = scmp.ne.s32.totalorder %s215, %s216
      %p227 = scmp.eq.s32.totalorder %s39, 0
      %p228 = por %p226, %p227
      %p229 = scmp.ne.s32.totalorder %s215, %s216
      %p230 = scmp.eq.s32.totalorder %s40, 5
      %p231 = por %p229, %p230
      %p233 = scmp.ne.s32.totalorder %s216, %s232
      %p234 = scmp.eq.s32.totalorder %s40, 0
      %p235 = por %p233, %p234
      %s236 = ssub.s32 %s42, %s49
      %p237 = scmp.eq.s32.totalorder %s236, 0
      %s239 = sadd.s32 %s238, 1
      %s240 = scalar_select %p237, %s238, %s239
      %p243 = pneg %p237
      %p244 = scmp.eq.s32.totalorder %s34, 5
      %p245 = por %p243, %p244
      %p246 = scmp.ne.s32.totalorder %s238, %s241
      %p247 = scmp.eq.s32.totalorder %s34, 0
      %p248 = por %p246, %p247
      %p249 = scmp.ne.s32.totalorder %s238, %s241
      %p250 = scmp.eq.s32.totalorder %s39, 5
      %p251 = por %p249, %p250
      %p252 = scmp.ne.s32.totalorder %s241, %s242
      %p253 = scmp.eq.s32.totalorder %s39, 0
      %p254 = por %p252, %p253
      %p255 = scmp.ne.s32.totalorder %s241, %s242
      %p256 = scmp.eq.s32.totalorder %s40, 5
      %p257 = por %p255, %p256
      %p259 = scmp.ne.s32.totalorder %s242, %s258
      %p260 = scmp.eq.s32.totalorder %s40, 0
      %p261 = por %p259, %p260
      %s262 = ssub.s32 %s42, %s49
      %p263 = scmp.eq.s32.totalorder %s262, 0
      %s265 = sadd.s32 %s264, 1
      %s266 = scalar_select %p263, %s264, %s265
      %p269 = pneg %p263
      %p270 = scmp.eq.s32.totalorder %s34, 5
      %p271 = por %p269, %p270
      %p272 = scmp.ne.s32.totalorder %s264, %s267
      %p273 = scmp.eq.s32.totalorder %s34, 0
      %p274 = por %p272, %p273
      %p275 = scmp.ne.s32.totalorder %s264, %s267
      %p276 = scmp.eq.s32.totalorder %s39, 5
      %p277 = por %p275, %p276
      %p278 = scmp.ne.s32.totalorder %s267, %s268
      %p279 = scmp.eq.s32.totalorder %s39, 0
      %p280 = por %p278, %p279
      %p281 = scmp.ne.s32.totalorder %s267, %s268
      %p282 = scmp.eq.s32.totalorder %s40, 5
      %p283 = por %p281, %p282
      %p285 = scmp.ne.s32.totalorder %s268, %s284
      %p286 = scmp.eq.s32.totalorder %s40, 0
      %p287 = por %p285, %p286
      %s288 = ssub.s32 %s42, %s49
      %p289 = scmp.eq.s32.totalorder %s288, 0
      %s291 = sadd.s32 %s290, 1
      %s292 = scalar_select %p289, %s290, %s291
      %p295 = pneg %p289
      %p296 = scmp.eq.s32.totalorder %s34, 5
      %p297 = por %p295, %p296
      %p298 = scmp.ne.s32.totalorder %s290, %s293
      %p299 = scmp.eq.s32.totalorder %s34, 0
      %p300 = por %p298, %p299
      %p301 = scmp.ne.s32.totalorder %s290, %s293
      %p302 = scmp.eq.s32.totalorder %s39, 5
      %p303 = por %p301, %p302
      %p304 = scmp.ne.s32.totalorder %s293, %s294
      %p305 = scmp.eq.s32.totalorder %s39, 0
      %p306 = por %p304, %p305
      %p307 = scmp.ne.s32.totalorder %s293, %s294
      %p308 = scmp.eq.s32.totalorder %s40, 5
      %p309 = por %p307, %p308
      %p311 = scmp.ne.s32.totalorder %s294, %s310
      %p312 = scmp.eq.s32.totalorder %s40, 0
      %p313 = por %p311, %p312
      %s314 = ssub.s32 %s42, %s49
      %p315 = scmp.eq.s32.totalorder %s314, 0
      %s317 = sadd.s32 %s316, 1
      %s318 = scalar_select %p315, %s316, %s317
      %p321 = pneg %p315
      %p322 = scmp.eq.s32.totalorder %s34, 5
      %p323 = por %p321, %p322
      %p324 = scmp.ne.s32.totalorder %s316, %s319
      %p325 = scmp.eq.s32.totalorder %s34, 0
      %p326 = por %p324, %p325
      %p327 = scmp.ne.s32.totalorder %s316, %s319
      %p328 = scmp.eq.s32.totalorder %s39, 5
      %p329 = por %p327, %p328
      %p330 = scmp.ne.s32.totalorder %s319, %s320
      %p331 = scmp.eq.s32.totalorder %s39, 0
      %p332 = por %p330, %p331
      %p333 = scmp.ne.s32.totalorder %s319, %s320
      %p334 = scmp.eq.s32.totalorder %s40, 5
      %p335 = por %p333, %p334
      %p337 = scmp.ne.s32.totalorder %s320, %s336
      %p338 = scmp.eq.s32.totalorder %s40, 0
      %p339 = por %p337, %p338
      %s340 = ssub.s32 %s42, %s49
      %p341 = scmp.eq.s32.totalorder %s340, 0
      %s343 = sadd.s32 %s342, 1
      %s344 = scalar_select %p341, %s342, %s343
      %p347 = pneg %p341
      %p348 = scmp.eq.s32.totalorder %s34, 5
      %p349 = por %p347, %p348
      %p350 = scmp.ne.s32.totalorder %s342, %s345
      %p351 = scmp.eq.s32.totalorder %s34, 0
      %p352 = por %p350, %p351
      %p353 = scmp.ne.s32.totalorder %s342, %s345
      %p354 = scmp.eq.s32.totalorder %s39, 5
      %p355 = por %p353, %p354
      %p356 = scmp.ne.s32.totalorder %s345, %s346
      %p357 = scmp.eq.s32.totalorder %s39, 0
      %p358 = por %p356, %p357
      %p359 = scmp.ne.s32.totalorder %s345, %s346
      %p360 = scmp.eq.s32.totalorder %s40, 5
      %p361 = por %p359, %p360
      %p363 = scmp.ne.s32.totalorder %s346, %s362
      %p364 = scmp.eq.s32.totalorder %s40, 0
      %p365 = por %p363, %p364
      %s366 = ssub.s32 %s42, %s49
      %p367 = scmp.eq.s32.totalorder %s366, 0
      %s369 = sadd.s32 %s368, 1
      %s370 = scalar_select %p367, %s368, %s369
      %p373 = pneg %p367
      %p374 = scmp.eq.s32.totalorder %s34, 5
      %p375 = por %p373, %p374
      %p376 = scmp.ne.s32.totalorder %s368, %s371
      %p377 = scmp.eq.s32.totalorder %s34, 0
      %p378 = por %p376, %p377
      %p379 = scmp.ne.s32.totalorder %s368, %s371
      %p380 = scmp.eq.s32.totalorder %s39, 5
      %p381 = por %p379, %p380
      %p382 = scmp.ne.s32.totalorder %s371, %s372
      %p383 = scmp.eq.s32.totalorder %s39, 0
      %p384 = por %p382, %p383
      %p385 = scmp.ne.s32.totalorder %s371, %s372
      %p386 = scmp.eq.s32.totalorder %s40, 5
      %p387 = por %p385, %p386
      %p389 = scmp.ne.s32.totalorder %s372, %s388
      %p390 = scmp.eq.s32.totalorder %s40, 0
      %p391 = por %p389, %p390
      %s392 = ssub.s32 %s41, %s53
      %p393 = scmp.eq.s32.totalorder %s392, 0
      %s395 = sadd.s32 %s394, 1
      %s396 = scalar_select %p393, %s394, %s395
      %p399 = pneg %p393
      %p400 = scmp.eq.s32.totalorder %s34, 5
      %p401 = por %p399, %p400
      %p402 = scmp.ne.s32.totalorder %s394, %s397
      %p403 = scmp.eq.s32.totalorder %s34, 0
      %p404 = por %p402, %p403
      %p405 = scmp.ne.s32.totalorder %s394, %s397
      %p406 = scmp.eq.s32.totalorder %s39, 5
      %p407 = por %p405, %p406
      %p408 = scmp.ne.s32.totalorder %s397, %s398
      %p409 = scmp.eq.s32.totalorder %s39, 0
      %p410 = por %p408, %p409
      %p411 = scmp.ne.s32.totalorder %s397, %s398
      %p412 = scmp.eq.s32.totalorder %s40, 5
      %p413 = por %p411, %p412
      %p415 = scmp.ne.s32.totalorder %s398, %s414
      %p416 = scmp.eq.s32.totalorder %s40, 0
      %p417 = por %p415, %p416
      %p418 = scmp.le.s32.totalorder 1, %s34
      %p419 = scmp.lt.s32.totalorder %s34, 7
      %p420 = pnand %p418, %p419
      %p421 = pneg %p420
      // Predicated region
      $region9: #{tpu_custom_call.1} parent=5 // pred_check
        _
      $region10: #{tpu_custom_call.1} parent=5 // pred_check_branch
        %423 = sbr.rel (%p420) target = $region12
      $region11: #{tpu_custom_call.1} parent=5 // pred_region
        %s424 = ssub.s32 %s34, 1
      $region12: #{tpu_custom_call.1} parent=5 // pred_fallthru
        _
      %p425 = scmp.lt.s32.totalorder %s34, 6
      // Predicated region
      $region13: #{tpu_custom_call.1} parent=5 // pred_check
        %p426 = pneg %p425
      $region14: #{tpu_custom_call.1} parent=5 // pred_check_branch
        %428 = sbr.rel (%p426) target = $region16
      $region15: #{tpu_custom_call.1} parent=5 // pred_region
        // Predicated region
        $region17: #{tpu_custom_call.1} parent=15 // pred_check
          %p429 = pneg %p66
        $region18: #{tpu_custom_call.1} parent=15 // pred_check_branch
          %431 = sbr.rel (%p429) target = $region20
        $region19: #{tpu_custom_call.1} parent=15 // pred_region
          %s432 = sand.u32 %s56, 1
          %s433 = scalar_lea.sflag [#allocation4], %s432
          %s434 = sand.u32 %s56, 1
          %s435 = smul.addr %s434, 8
          %s436 = scalar_lea.vmem [#allocation3], %s435
          %438 = vsyncadd %s433, 0
          %s439 = smul.addr %s41, 8
          %s440 = scalar_lea.hbm %s0, %s439
          %s442 = sshll.u32 %s440, 4
          %s443 = int_to_ptr.hbm [resolvable:$true] %s442
          %s444 = sshll.u32 %s436, 4
          %s445 = int_to_ptr.vmem [resolvable:$true] %s444
          %447 = dma.hbm_to_vmem [thread:$0]  %s443, 128, %s445, %s433
        $region20: #{tpu_custom_call.1} parent=15 // pred_fallthru
          _
        // Predicated region
        $region21: #{tpu_custom_call.1} parent=15 // pred_check
          %p448 = pneg %p92
        $region22: #{tpu_custom_call.1} parent=15 // pred_check_branch
          %450 = sbr.rel (%p448) target = $region24
        $region23: #{tpu_custom_call.1} parent=15 // pred_region
          %s451 = sand.u32 %s34, 1
          %s452 = scalar_lea.sflag [#allocation7], %s451
          %s453 = sand.u32 %s82, 1
          %s454 = scalar_lea.vmem [#allocation6], %s453
          %456 = vsyncadd %s452, 0
          %s457 = scalar_lea.hbm %s1, %s42
          %s459 = sshll.u32 %s457, 4
          %s460 = int_to_ptr.hbm [resolvable:$true] %s459
          %s461 = sshll.u32 %s454, 4
          %s462 = int_to_ptr.vmem [resolvable:$true] %s461
          %464 = dma.hbm_to_vmem [thread:$0]  %s460, 16, %s462, %s452
        $region24: #{tpu_custom_call.1} parent=15 // pred_fallthru
          _
        // Predicated region
        $region25: #{tpu_custom_call.1} parent=15 // pred_check
          %p465 = pneg %p118
        $region26: #{tpu_custom_call.1} parent=15 // pred_check_branch
          %467 = sbr.rel (%p465) target = $region28
        $region27: #{tpu_custom_call.1} parent=15 // pred_region
          %s468 = sand.u32 %s34, 1
          %s469 = scalar_lea.sflag [#allocation7], %s468
          %s470 = sand.u32 %s108, 1
          %s471 = scalar_lea.vmem [#allocation8], %s470
          %473 = vsyncadd %s469, 0
          %s474 = scalar_lea.hbm %s2, %s42
          %s476 = sshll.u32 %s474, 4
          %s477 = int_to_ptr.hbm [resolvable:$true] %s476
          %s478 = sshll.u32 %s471, 4
          %s479 = int_to_ptr.vmem [resolvable:$true] %s478
          %481 = dma.hbm_to_vmem [thread:$0]  %s477, 16, %s479, %s469
        $region28: #{tpu_custom_call.1} parent=15 // pred_fallthru
          _
        // Predicated region
        $region29: #{tpu_custom_call.1} parent=15 // pred_check
          %p482 = pneg %p144
        $region30: #{tpu_custom_call.1} parent=15 // pred_check_branch
          %484 = sbr.rel (%p482) target = $region32
        $region31: #{tpu_custom_call.1} parent=15 // pred_region
          %p485 = scmp.lt.s32.totalorder %s42, 2
          %s486 = scalar_select %p485, %s42, 2
          %s487 = smul.addr %s486, 4
          %s488 = smul.addr %s487, 8
          %s489 = scalar_lea.vmem %s3, %s488
        $region32: #{tpu_custom_call.1} parent=15 // pred_fallthru
          _
        // Predicated region
        $region33: #{tpu_custom_call.1} parent=15 // pred_check
          %p490 = pneg %p170
        $region34: #{tpu_custom_call.1} parent=15 // pred_check_branch
          %492 = sbr.rel (%p490) target = $region36
        $region35: #{tpu_custom_call.1} parent=15 // pred_region
          %p493 = scmp.lt.s32.totalorder %s42, 2
          %s494 = scalar_select %p493, %s42, 2
          %s495 = scalar_lea.vmem %s4, %s494
        $region36: #{tpu_custom_call.1} parent=15 // pred_fallthru
          _
        // Predicated region
        $region37: #{tpu_custom_call.1} parent=15 // pred_check
          %p496 = pneg %p196
        $region38: #{tpu_custom_call.1} parent=15 // pred_check_branch
          %498 = sbr.rel (%p496) target = $region40
        $region39: #{tpu_custom_call.1} parent=15 // pred_region
          %p499 = scmp.lt.s32.totalorder %s42, 2
          %s500 = scalar_select %p499, %s42, 2
          %s501 = smul.addr %s500, 4
          %s502 = smul.addr %s501, 8
          %s503 = scalar_lea.vmem %s5, %s502
        $region40: #{tpu_custom_call.1} parent=15 // pred_fallthru
          _
        // Predicated region
        $region41: #{tpu_custom_call.1} parent=15 // pred_check
          %p504 = pneg %p222
        $region42: #{tpu_custom_call.1} parent=15 // pred_check_branch
          %506 = sbr.rel (%p504) target = $region44
        $region43: #{tpu_custom_call.1} parent=15 // pred_region
          %s507 = sand.u32 %s34, 1
          %s508 = scalar_lea.sflag [#allocation10], %s507
          %s509 = sand.u32 %s212, 1
          %s510 = scalar_lea.vmem [#allocation9], %s509
          %512 = vsyncadd %s508, 0
          %s513 = scalar_lea.hbm %s6, %s42
          %s515 = sshll.u32 %s513, 4
          %s516 = int_to_ptr.hbm [resolvable:$true] %s515
          %s517 = sshll.u32 %s510, 4
          %s518 = int_to_ptr.vmem [resolvable:$true] %s517
          %520 = dma.hbm_to_vmem [thread:$0]  %s516, 16, %s518, %s508
        $region44: #{tpu_custom_call.1} parent=15 // pred_fallthru
          _
        // Predicated region
        $region45: #{tpu_custom_call.1} parent=15 // pred_check
          %p521 = pneg %p248
        $region46: #{tpu_custom_call.1} parent=15 // pred_check_branch
          %523 = sbr.rel (%p521) target = $region48
        $region47: #{tpu_custom_call.1} parent=15 // pred_region
          %s524 = sand.u32 %s34, 1
          %s525 = scalar_lea.sflag [#allocation10], %s524
          %s526 = sand.u32 %s238, 1
          %s527 = scalar_lea.vmem [#allocation11], %s526
          %529 = vsyncadd %s525, 0
          %s530 = scalar_lea.hbm %s7, %s42
          %s532 = sshll.u32 %s530, 4
          %s533 = int_to_ptr.hbm [resolvable:$true] %s532
          %s534 = sshll.u32 %s527, 4
          %s535 = int_to_ptr.vmem [resolvable:$true] %s534
          %537 = dma.hbm_to_vmem [thread:$0]  %s533, 16, %s535, %s525
        $region48: #{tpu_custom_call.1} parent=15 // pred_fallthru
          _
        // Predicated region
        $region49: #{tpu_custom_call.1} parent=15 // pred_check
          %p538 = pneg %p274
        $region50: #{tpu_custom_call.1} parent=15 // pred_check_branch
          %540 = sbr.rel (%p538) target = $region52
        $region51: #{tpu_custom_call.1} parent=15 // pred_region
          %p541 = scmp.lt.s32.totalorder %s42, 2
          %s542 = scalar_select %p541, %s42, 2
          %s543 = scalar_lea.vmem %s8, %s542
        $region52: #{tpu_custom_call.1} parent=15 // pred_fallthru
          _
        // Predicated region
        $region53: #{tpu_custom_call.1} parent=15 // pred_check
          %p544 = pneg %p300
        $region54: #{tpu_custom_call.1} parent=15 // pred_check_branch
          %546 = sbr.rel (%p544) target = $region56
        $region55: #{tpu_custom_call.1} parent=15 // pred_region
          %p547 = scmp.lt.s32.totalorder %s42, 2
          %s548 = scalar_select %p547, %s42, 2
          %s549 = smul.addr %s548, 4
          %s550 = smul.addr %s549, 8
          %s551 = scalar_lea.vmem %s9, %s550
        $region56: #{tpu_custom_call.1} parent=15 // pred_fallthru
          _
        // Predicated region
        $region57: #{tpu_custom_call.1} parent=15 // pred_check
          %p552 = pneg %p326
        $region58: #{tpu_custom_call.1} parent=15 // pred_check_branch
          %554 = sbr.rel (%p552) target = $region60
        $region59: #{tpu_custom_call.1} parent=15 // pred_region
          %s555 = sand.u32 %s316, 1
          %s556 = scalar_lea.sflag [#allocation13], %s555
          %s557 = sand.u32 %s316, 1
          %s558 = scalar_lea.vmem [#allocation12], %s557
          %560 = vsyncadd %s556, 0
          %s561 = scalar_lea.hbm %s10, %s42
          %s563 = sshll.u32 %s561, 4
          %s564 = int_to_ptr.hbm [resolvable:$true] %s563
          %s565 = sshll.u32 %s558, 4
          %s566 = int_to_ptr.vmem [resolvable:$true] %s565
          %568 = dma.hbm_to_vmem [thread:$0]  %s564, 16, %s566, %s556
        $region60: #{tpu_custom_call.1} parent=15 // pred_fallthru
          _
        // Predicated region
        $region61: #{tpu_custom_call.1} parent=15 // pred_check
          %p569 = pneg %p352
        $region62: #{tpu_custom_call.1} parent=15 // pred_check_branch
          %571 = sbr.rel (%p569) target = $region64
        $region63: #{tpu_custom_call.1} parent=15 // pred_region
          %p572 = scmp.lt.s32.totalorder %s42, 2
          %s573 = scalar_select %p572, %s42, 2
          %s574 = smul.addr %s573, 8
          %s575 = smul.addr %s574, 8
          %s576 = scalar_lea.vmem %s11, %s575
        $region64: #{tpu_custom_call.1} parent=15 // pred_fallthru
          _
        // Predicated region
        $region65: #{tpu_custom_call.1} parent=15 // pred_check
          %p577 = pneg %p378
        $region66: #{tpu_custom_call.1} parent=15 // pred_check_branch
          %579 = sbr.rel (%p577) target = $region68
        $region67: #{tpu_custom_call.1} parent=15 // pred_region
          %p580 = scmp.lt.s32.totalorder %s42, 2
          %s581 = scalar_select %p580, %s42, 2
          %s582 = scalar_lea.vmem %s12, %s581
        $region68: #{tpu_custom_call.1} parent=15 // pred_fallthru
          _
      $region16: #{tpu_custom_call.1} parent=5 // pred_fallthru
        _
      %p583 = scmp.le.s32.totalorder 1, %s34
      %p584 = scmp.lt.s32.totalorder %s34, 7
      %p585 = pnand %p583, %p584
      %p586 = pneg %p585
      // Predicated region
      $region69: #{tpu_custom_call.1} parent=5 // pred_check
        _
      $region70: #{tpu_custom_call.1} parent=5 // pred_check_branch
        %588 = sbr.rel (%p585) target = $region72
      $region71: #{tpu_custom_call.1} parent=5 // pred_region
        %s589 = ssub.s32 %s34, 1
        %s590 = sand.u32 %s59, 1
        %s591 = scalar_lea.sflag [#allocation4], %s590
        %s592 = sand.u32 %s59, 1
        %s593 = smul.addr %s592, 8
        %s594 = scalar_lea.vmem [#allocation3], %s593
        // Predicated region
        $region73: #{tpu_custom_call.1} parent=71 // pred_check
          %p595 = pneg %p72
        $region74: #{tpu_custom_call.1} parent=71 // pred_check_branch
          %597 = sbr.rel (%p595) target = $region76
        $region75: #{tpu_custom_call.1} parent=71 // pred_region
          %599 = dma.done %s591, 128
        $region76: #{tpu_custom_call.1} parent=71 // pred_fallthru
          _
        %s600 = sand.u32 %s39, 1
        %s601 = scalar_lea.sflag [#allocation7], %s600
        %s602 = sand.u32 %s85, 1
        %s603 = scalar_lea.vmem [#allocation6], %s602
        // Predicated region
        $region77: #{tpu_custom_call.1} parent=71 // pred_check
          %p604 = pneg %p98
        $region78: #{tpu_custom_call.1} parent=71 // pred_check_branch
          %606 = sbr.rel (%p604) target = $region80
        $region79: #{tpu_custom_call.1} parent=71 // pred_region
          %608 = dma.done %s601, 16
        $region80: #{tpu_custom_call.1} parent=71 // pred_fallthru
          _
        %s609 = sand.u32 %s39, 1
        %s610 = scalar_lea.sflag [#allocation7], %s609
        %s611 = sand.u32 %s111, 1
        %s612 = scalar_lea.vmem [#allocation8], %s611
        // Predicated region
        $region81: #{tpu_custom_call.1} parent=71 // pred_check
          %p613 = pneg %p124
        $region82: #{tpu_custom_call.1} parent=71 // pred_check_branch
          %615 = sbr.rel (%p613) target = $region84
        $region83: #{tpu_custom_call.1} parent=71 // pred_region
          %617 = dma.done %s610, 16
        $region84: #{tpu_custom_call.1} parent=71 // pred_fallthru
          _
        %s618 = sand.u32 %s39, 1
        %s619 = scalar_lea.sflag [#allocation10], %s618
        %s620 = sand.u32 %s215, 1
        %s621 = scalar_lea.vmem [#allocation9], %s620
        // Predicated region
        $region85: #{tpu_custom_call.1} parent=71 // pred_check
          %p622 = pneg %p228
        $region86: #{tpu_custom_call.1} parent=71 // pred_check_branch
          %624 = sbr.rel (%p622) target = $region88
        $region87: #{tpu_custom_call.1} parent=71 // pred_region
          %626 = dma.done %s619, 16
        $region88: #{tpu_custom_call.1} parent=71 // pred_fallthru
          _
        %s627 = sand.u32 %s39, 1
        %s628 = scalar_lea.sflag [#allocation10], %s627
        %s629 = sand.u32 %s241, 1
        %s630 = scalar_lea.vmem [#allocation11], %s629
        // Predicated region
        $region89: #{tpu_custom_call.1} parent=71 // pred_check
          %p631 = pneg %p254
        $region90: #{tpu_custom_call.1} parent=71 // pred_check_branch
          %633 = sbr.rel (%p631) target = $region92
        $region91: #{tpu_custom_call.1} parent=71 // pred_region
          %635 = dma.done %s628, 16
        $region92: #{tpu_custom_call.1} parent=71 // pred_fallthru
          _
        %s636 = sand.u32 %s319, 1
        %s637 = scalar_lea.sflag [#allocation13], %s636
        %s638 = sand.u32 %s319, 1
        %s639 = scalar_lea.vmem [#allocation12], %s638
        // Predicated region
        $region93: #{tpu_custom_call.1} parent=71 // pred_check
          %p640 = pneg %p332
        $region94: #{tpu_custom_call.1} parent=71 // pred_check_branch
          %642 = sbr.rel (%p640) target = $region96
        $region95: #{tpu_custom_call.1} parent=71 // pred_region
          %644 = dma.done %s637, 16
        $region96: #{tpu_custom_call.1} parent=71 // pred_fallthru
          _
        %s645 = sand.u32 %s59, 1
        %s646 = scalar_lea.sflag [#allocation4], %s645
        %s647 = sand.u32 %s59, 1
        %s648 = smul.addr %s647, 8
        %s649 = scalar_lea.vmem [#allocation3], %s648
        %p650 = pneg %p72
        %p651 = pneg %p69
        %s652 = sand.u32 %s39, 1
        %s653 = scalar_lea.sflag [#allocation7], %s652
        %s654 = sand.u32 %s85, 1
        %s655 = scalar_lea.vmem [#allocation6], %s654
        %p656 = pneg %p98
        %p657 = pneg %p95
        %s658 = sand.u32 %s39, 1
        %s659 = scalar_lea.sflag [#allocation7], %s658
        %s660 = sand.u32 %s111, 1
        %s661 = scalar_lea.vmem [#allocation8], %s660
        %p662 = pneg %p124
        %p663 = pneg %p121
        %p664 = scmp.lt.s32.totalorder %s44, 2
        %s665 = scalar_select %p664, %s44, 2
        %s666 = smul.addr %s665, 4
        %s667 = smul.addr %s666, 8
        %s668 = scalar_lea.vmem %s3, %s667
        %p669 = pneg %p150
        %p670 = pneg %p147
        %p671 = scmp.lt.s32.totalorder %s44, 2
        %s672 = scalar_select %p671, %s44, 2
        %s673 = scalar_lea.vmem %s4, %s672
        %p674 = pneg %p176
        %p675 = pneg %p173
        %p676 = scmp.lt.s32.totalorder %s44, 2
        %s677 = scalar_select %p676, %s44, 2
        %s678 = smul.addr %s677, 4
        %s679 = smul.addr %s678, 8
        %s680 = scalar_lea.vmem %s5, %s679
        %p681 = pneg %p202
        %p682 = pneg %p199
        %s683 = sand.u32 %s39, 1
        %s684 = scalar_lea.sflag [#allocation10], %s683
        %s685 = sand.u32 %s215, 1
        %s686 = scalar_lea.vmem [#allocation9], %s685
        %p687 = pneg %p228
        %p688 = pneg %p225
        %s689 = sand.u32 %s39, 1
        %s690 = scalar_lea.sflag [#allocation10], %s689
        %s691 = sand.u32 %s241, 1
        %s692 = scalar_lea.vmem [#allocation11], %s691
        %p693 = pneg %p254
        %p694 = pneg %p251
        %p695 = scmp.lt.s32.totalorder %s44, 2
        %s696 = scalar_select %p695, %s44, 2
        %s697 = scalar_lea.vmem %s8, %s696
        %p698 = pneg %p280
        %p699 = pneg %p277
        %p700 = scmp.lt.s32.totalorder %s44, 2
        %s701 = scalar_select %p700, %s44, 2
        %s702 = smul.addr %s701, 4
        %s703 = smul.addr %s702, 8
        %s704 = scalar_lea.vmem %s9, %s703
        %p705 = pneg %p306
        %p706 = pneg %p303
        %s707 = sand.u32 %s319, 1
        %s708 = scalar_lea.sflag [#allocation13], %s707
        %s709 = sand.u32 %s319, 1
        %s710 = scalar_lea.vmem [#allocation12], %s709
        %p711 = pneg %p332
        %p712 = pneg %p329
        %p713 = scmp.lt.s32.totalorder %s44, 2
        %s714 = scalar_select %p713, %s44, 2
        %s715 = smul.addr %s714, 8
        %s716 = smul.addr %s715, 8
        %s717 = scalar_lea.vmem %s11, %s716
        %p718 = pneg %p358
        %p719 = pneg %p355
        %p720 = scmp.lt.s32.totalorder %s44, 2
        %s721 = scalar_select %p720, %s44, 2
        %s722 = scalar_lea.vmem %s12, %s721
        %p723 = pneg %p384
        %p724 = pneg %p381
        %p725 = pneg %p410
        %p726 = pneg %p407
        %s727 = sand.u32 %s397, 1
        %s728 = scalar_lea.sflag [#allocation5], %s727
        %s729 = sand.u32 %s397, 1
        %s730 = smul.addr %s729, 8
        %s731 = scalar_lea.vmem [#allocation14], %s730
        %p732 = scmp.lt.s32.totalorder %s44, 2
        %s733 = scalar_select %p732, %s44, 2
        %s734 = smul.addr %s733, 4
        %s735 = smul.addr %s734, 8
        %s736 = scalar_lea.vmem %s3, %s735
        %p737 = scmp.lt.s32.totalorder %s44, 2
        %s738 = scalar_select %p737, %s44, 2
        %s739 = scalar_lea.vmem %s4, %s738
        %p740 = scmp.lt.s32.totalorder %s44, 2
        %s741 = scalar_select %p740, %s44, 2
        %s742 = smul.addr %s741, 4
        %s743 = smul.addr %s742, 8
        %s744 = scalar_lea.vmem %s5, %s743
        %p745 = scmp.lt.s32.totalorder %s44, 2
        %s746 = scalar_select %p745, %s44, 2
        %s747 = scalar_lea.vmem %s8, %s746
        %p748 = scmp.lt.s32.totalorder %s44, 2
        %s749 = scalar_select %p748, %s44, 2
        %s750 = smul.addr %s749, 4
        %s751 = smul.addr %s750, 8
        %s752 = scalar_lea.vmem %s9, %s751
        %p753 = scmp.lt.s32.totalorder %s44, 2
        %s754 = scalar_select %p753, %s44, 2
        %s755 = smul.addr %s754, 8
        %s756 = smul.addr %s755, 8
        %s757 = scalar_lea.vmem %s11, %s756
        %p758 = scmp.lt.s32.totalorder %s44, 2
        %s759 = scalar_select %p758, %s44, 2
        %s760 = scalar_lea.vmem %s12, %s759
        %p761 = scmp.eq.s32.totalorder %s44, 0
        // Predicated region
        $region97: #{tpu_custom_call.1} parent=71 // pred_check
          %p762 = pneg %p761
        $region98: #{tpu_custom_call.1} parent=71 // pred_check_branch
          %764 = sbr.rel (%p762) target = $region100
        $region99: #{tpu_custom_call.1} parent=71 // pred_region
          %v765 = vld [vmem:[%s594] sm:$0xff]
          %vm766 = vcmask 261120
          %767 = vst.msk [vmem:[%s731] sm:$0xff] %vm766, %v765
        $region100: #{tpu_custom_call.1} parent=71 // pred_fallthru
          _
        %v768 = vld [vmem:[%s731] sm:$0xff]
        %v769 = vld [vmem:[%s603] sm:$0x1]
        %v770 = vld [vmem:[%s612] sm:$0x1]
        %vm771 = vcmask 261120
        %v772 = vsel %vm771, %v768, 0.0
        %773 = vadd.xlane.f32.xlu0 %v772
        %v774 = vpop.xlane.xlu0 %773
        %v775 = vrcp.pop 32.0
        %v776 = vmul.f32 32.0, %v775
        %v777 = vsub.f32 1.0, %v776
        %v778 = vmul.f32 %v775, %v777
        %v779 = vadd.f32 %v775, %v778
        %vm780 = vweird.f32 %v775
        %v781 = vsel %vm780, %v775, %v779
        %v782 = vmul.f32 %v774, %v781
        %v783 = vsub.f32 %v768, %v782
        %v784 = vmul.f32 %v783, %v783
        %v785 = vsel %vm771, %v784, 0.0
        %786 = vadd.xlane.f32.xlu0 %v785
        %v787 = vpop.xlane.xlu0 %786
        %v788 = vmul.f32 %v787, %v781
        %v789 = vadd.f32 %v788, 1e-08
        %v790 = vrsqrt.pop %v789
        %v791 = vmul.f32 %v790, %v789
        %v792 = vmul.f32 %v791, %v790
        %v793 = vmul.f32 0.5, %v792
        %v794 = vsub.f32 1.5, %v793
        %v795 = vmul.f32 %v790, %v794
        %vm796 = vweird.f32 %v789
        %vm797 = vweird.f32 %v790
        %vm798 = vmor %vm796, %vm797
        %v799 = vsel %vm798, %v790, %v795
        %v800 = vmul.f32 %v783, %v799
        %v802 = vperm.slane %v769, 0
        %v804 = vmul.f32 %v800, %v802
        %v806 = vperm.slane %v770, 0
        %v808 = vadd.f32 %v804, %v806
        %v809 = vld [vmem:[%s736] sm:$0xff]
        %v810 = vld [vmem:[%s736 + $0x8] sm:$0xff]
        %v811 = vld [vmem:[%s736 + $0x10] sm:$0xff]
        %v812 = vld [vmem:[%s736 + $0x18] sm:$0xff]
        %v813 = vld [vmem:[%s739] sm:$0x1]
        %v815 = vperm.slane %v813, 0
        %v818 = vsel %vm771, %v808, 0
        %820 = vmatpush.msra.mxu0 0.0
        %821 = vmatpush.msra.mxu0 0.0
        %822 = vmatpush.msra.mxu0 0.0
        %823 = vmatpush.msra.mxu0 0.0
        %824 = vmatpush.msra.mxu0 0.0
        %825 = vmatpush.msra.mxu0 0.0
        %826 = vmatpush.msra.mxu0 0.0
        %827 = vmatpush.msra.mxu0 0.0
        %828 = vmatpush.msra.mxu0 0.0
        %829 = vmatpush.msra.mxu0 0.0
        %830 = vmatpush.msra.mxu0 0.0
        %831 = vmatpush.msra.mxu0 0.0
        %832 = vmatpush.msra.mxu0 %v812
        %833 = vmatpush.msra.mxu0 %v811
        %834 = vmatpush.msra.mxu0 %v810
        %835 = vmatpush.msra.mxu0 %v809
        %836 = vmatmul.f32.gmra.mxu0 %v818
        %v837 = vpop.f32.mrf.mxu0
        %v838 = vadd.f32 %v815, %v837
        %839 = vdwg.mxu0
        %841 = vrot.lane.b32.xlu0 %v838, 96
        %v842 = vpop.permute.xlu0 %841
        %vm843 = vcmask 64512
        %v844 = vsel %vm843, %v838, 0
        %v846 = vsel %vm843, %v842, 0
        %848 = vmatpush.xpose.msra.mxu0 0.0
        %849 = vmatpush.xpose.msra.mxu0 0.0
        %850 = vmatpush.xpose.msra.mxu0 0.0
        %851 = vmatpush.xpose.msra.mxu0 0.0
        %852 = vmatpush.xpose.msra.mxu0 0.0
        %853 = vmatpush.xpose.msra.mxu0 0.0
        %854 = vmatpush.xpose.msra.mxu0 0.0
        %855 = vmatpush.xpose.msra.mxu0 0.0
        %856 = vmatpush.xpose.msra.mxu0 0.0
        %857 = vmatpush.xpose.msra.mxu0 0.0
        %858 = vmatpush.xpose.msra.mxu0 0.0
        %859 = vmatpush.xpose.msra.mxu0 0.0
        %860 = vmatpush.xpose.msra.mxu0 0.0
        %861 = vmatpush.xpose.msra.mxu0 0.0
        %862 = vmatpush.xpose.msra.mxu0 0.0
        %863 = vmatpush.xpose.msra.mxu0 %v846
        %864 = vmatmul.f32.gmra.mxu0 %v844
        %v865 = vpop.f32.mrf.mxu0
        %v866 = vadd.f32 0.0, %v865
        %867 = vdwg.mxu0
        %v868 = vsel %vm843, %v866, -inf
        %869 = vmax.xlane.f32.xlu0 %v868
        %v870 = vpop.xlane.xlu0 %869
        %v871 = vsub.f32 %v866, %v870
        %v872 = vmul.f32 %v871, 1.442695
        %v873 = vpow.pop %v872
        %v874 = vsel %vm843, %v873, 0.0
        %875 = vadd.xlane.f32.xlu0 %v874
        %v876 = vpop.xlane.xlu0 %875
        %v877 = vrcp.pop %v876
        %v878 = vmul.f32 %v873, %v877
        %879 = vrot.lane.b32.xlu0 %v838, 64
        %v880 = vpop.permute.xlu0 %879
        %v883 = vsel %vm843, %v878, 0
        %885 = vmatpush.msra.mxu0 0.0
        %886 = vmatpush.msra.mxu0 0.0
        %887 = vmatpush.msra.mxu0 0.0
        %888 = vmatpush.msra.mxu0 0.0
        %889 = vmatpush.msra.mxu0 0.0
        %890 = vmatpush.msra.mxu0 0.0
        %891 = vmatpush.msra.mxu0 0.0
        %892 = vmatpush.msra.mxu0 0.0
        %893 = vmatpush.msra.mxu0 0.0
        %894 = vmatpush.msra.mxu0 0.0
        %895 = vmatpush.msra.mxu0 0.0
        %896 = vmatpush.msra.mxu0 0.0
        %897 = vmatpush.msra.mxu0 0.0
        %898 = vmatpush.msra.mxu0 0.0
        %899 = vmatpush.msra.mxu0 0.0
        %900 = vmatpush.msra.mxu0 %v880
        %901 = vmatmul.f32.gmra.mxu0 %v883
        %v902 = vpop.f32.mrf.mxu0
        %v903 = vadd.f32 0.0, %v902
        %904 = vdwg.mxu0
        %905 = vst.msk [vmem:[#allocation2] sm:$0xff] %vm843, %v903
        %906 = vrot.lane.b32.xlu0 %v838, 120
        %v907 = vpop.permute.xlu0 %906
        %908 = vrot.lane.b32.xlu0 %v838, 88
        %v909 = vpop.permute.xlu0 %908
        %v910 = vsel %vm843, %v907, 0
        %v912 = vsel %vm843, %v909, 0
        %914 = vmatpush.xpose.msra.mxu0 0.0
        %915 = vmatpush.xpose.msra.mxu0 0.0
        %916 = vmatpush.xpose.msra.mxu0 0.0
        %917 = vmatpush.xpose.msra.mxu0 0.0
        %918 = vmatpush.xpose.msra.mxu0 0.0
        %919 = vmatpush.xpose.msra.mxu0 0.0
        %920 = vmatpush.xpose.msra.mxu0 0.0
        %921 = vmatpush.xpose.msra.mxu0 0.0
        %922 = vmatpush.xpose.msra.mxu0 0.0
        %923 = vmatpush.xpose.msra.mxu0 0.0
        %924 = vmatpush.xpose.msra.mxu0 0.0
        %925 = vmatpush.xpose.msra.mxu0 0.0
        %926 = vmatpush.xpose.msra.mxu0 0.0
        %927 = vmatpush.xpose.msra.mxu0 0.0
        %928 = vmatpush.xpose.msra.mxu0 0.0
        %929 = vmatpush.xpose.msra.mxu0 %v912
        %930 = vmatmul.f32.gmra.mxu0 %v910
        %v931 = vpop.f32.mrf.mxu0
        %v932 = vadd.f32 0.0, %v931
        %933 = vdwg.mxu0
        %v934 = vsel %vm843, %v932, -inf
        %935 = vmax.xlane.f32.xlu0 %v934
        %v936 = vpop.xlane.xlu0 %935
        %v937 = vsub.f32 %v932, %v936
        %v938 = vmul.f32 %v937, 1.442695
        %v939 = vpow.pop %v938
        %v940 = vsel %vm843, %v939, 0.0
        %941 = vadd.xlane.f32.xlu0 %v940
        %v942 = vpop.xlane.xlu0 %941
        %v943 = vrcp.pop %v942
        %v944 = vmul.f32 %v939, %v943
        %945 = vrot.lane.b32.xlu0 %v838, 56
        %v946 = vpop.permute.xlu0 %945
        %v949 = vsel %vm843, %v944, 0
        %951 = vmatpush.msra.mxu0 0.0
        %952 = vmatpush.msra.mxu0 0.0
        %953 = vmatpush.msra.mxu0 0.0
        %954 = vmatpush.msra.mxu0 0.0
        %955 = vmatpush.msra.mxu0 0.0
        %956 = vmatpush.msra.mxu0 0.0
        %957 = vmatpush.msra.mxu0 0.0
        %958 = vmatpush.msra.mxu0 0.0
        %959 = vmatpush.msra.mxu0 0.0
        %960 = vmatpush.msra.mxu0 0.0
        %961 = vmatpush.msra.mxu0 0.0
        %962 = vmatpush.msra.mxu0 0.0
        %963 = vmatpush.msra.mxu0 0.0
        %964 = vmatpush.msra.mxu0 0.0
        %965 = vmatpush.msra.mxu0 0.0
        %966 = vmatpush.msra.mxu0 %v946
        %967 = vmatmul.f32.gmra.mxu0 %v949
        %v968 = vpop.f32.mrf.mxu0
        %v969 = vadd.f32 0.0, %v968
        %970 = vdwg.mxu0
        %972 = vrot.lane.b32.xlu0 %v969, 8
        %v973 = vpop.permute.xlu0 %972
        %vm975 = vcmask 130112
        %976 = vst.msk [vmem:[#allocation2] sm:$0xff] %vm975, %v973
        %977 = vrot.lane.b32.xlu0 %v838, 112
        %v978 = vpop.permute.xlu0 %977
        %979 = vrot.lane.b32.xlu0 %v838, 80
        %v980 = vpop.permute.xlu0 %979
        %v981 = vsel %vm843, %v978, 0
        %v983 = vsel %vm843, %v980, 0
        %985 = vmatpush.xpose.msra.mxu0 0.0
        %986 = vmatpush.xpose.msra.mxu0 0.0
        %987 = vmatpush.xpose.msra.mxu0 0.0
        %988 = vmatpush.xpose.msra.mxu0 0.0
        %989 = vmatpush.xpose.msra.mxu0 0.0
        %990 = vmatpush.xpose.msra.mxu0 0.0
        %991 = vmatpush.xpose.msra.mxu0 0.0
        %992 = vmatpush.xpose.msra.mxu0 0.0
        %993 = vmatpush.xpose.msra.mxu0 0.0
        %994 = vmatpush.xpose.msra.mxu0 0.0
        %995 = vmatpush.xpose.msra.mxu0 0.0
        %996 = vmatpush.xpose.msra.mxu0 0.0
        %997 = vmatpush.xpose.msra.mxu0 0.0
        %998 = vmatpush.xpose.msra.mxu0 0.0
        %999 = vmatpush.xpose.msra.mxu0 0.0
        %1000 = vmatpush.xpose.msra.mxu0 %v983
        %1001 = vmatmul.f32.gmra.mxu0 %v981
        %v1002 = vpop.f32.mrf.mxu0
        %v1003 = vadd.f32 0.0, %v1002
        %1004 = vdwg.mxu0
        %v1005 = vsel %vm843, %v1003, -inf
        %1006 = vmax.xlane.f32.xlu0 %v1005
        %v1007 = vpop.xlane.xlu0 %1006
        %v1008 = vsub.f32 %v1003, %v1007
        %v1009 = vmul.f32 %v1008, 1.442695
        %v1010 = vpow.pop %v1009
        %v1011 = vsel %vm843, %v1010, 0.0
        %1012 = vadd.xlane.f32.xlu0 %v1011
        %v1013 = vpop.xlane.xlu0 %1012
        %v1014 = vrcp.pop %v1013
        %v1015 = vmul.f32 %v1010, %v1014
        %1016 = vrot.lane.b32.xlu0 %v838, 48
        %v1017 = vpop.permute.xlu0 %1016
        %v1020 = vsel %vm843, %v1015, 0
        %1022 = vmatpush.msra.mxu0 0.0
        %1023 = vmatpush.msra.mxu0 0.0
        %1024 = vmatpush.msra.mxu0 0.0
        %1025 = vmatpush.msra.mxu0 0.0
        %1026 = vmatpush.msra.mxu0 0.0
        %1027 = vmatpush.msra.mxu0 0.0
        %1028 = vmatpush.msra.mxu0 0.0
        %1029 = vmatpush.msra.mxu0 0.0
        %1030 = vmatpush.msra.mxu0 0.0
        %1031 = vmatpush.msra.mxu0 0.0
        %1032 = vmatpush.msra.mxu0 0.0
        %1033 = vmatpush.msra.mxu0 0.0
        %1034 = vmatpush.msra.mxu0 0.0
        %1035 = vmatpush.msra.mxu0 0.0
        %1036 = vmatpush.msra.mxu0 0.0
        %1037 = vmatpush.msra.mxu0 %v1017
        %1038 = vmatmul.f32.gmra.mxu0 %v1020
        %v1039 = vpop.f32.mrf.mxu0
        %v1040 = vadd.f32 0.0, %v1039
        %1041 = vdwg.mxu0
        %1043 = vrot.lane.b32.xlu0 %v1040, 16
        %v1044 = vpop.permute.xlu0 %1043
        %vm1046 = vcmask 195712
        %1047 = vst.msk [vmem:[#allocation2] sm:$0xff] %vm1046, %v1044
        %1048 = vrot.lane.b32.xlu0 %v838, 104
        %v1049 = vpop.permute.xlu0 %1048
        %1050 = vrot.lane.b32.xlu0 %v838, 72
        %v1051 = vpop.permute.xlu0 %1050
        %v1052 = vsel %vm843, %v1049, 0
        %v1054 = vsel %vm843, %v1051, 0
        %1056 = vmatpush.xpose.msra.mxu0 0.0
        %1057 = vmatpush.xpose.msra.mxu0 0.0
        %1058 = vmatpush.xpose.msra.mxu0 0.0
        %1059 = vmatpush.xpose.msra.mxu0 0.0
        %1060 = vmatpush.xpose.msra.mxu0 0.0
        %1061 = vmatpush.xpose.msra.mxu0 0.0
        %1062 = vmatpush.xpose.msra.mxu0 0.0
        %1063 = vmatpush.xpose.msra.mxu0 0.0
        %1064 = vmatpush.xpose.msra.mxu0 0.0
        %1065 = vmatpush.xpose.msra.mxu0 0.0
        %1066 = vmatpush.xpose.msra.mxu0 0.0
        %1067 = vmatpush.xpose.msra.mxu0 0.0
        %1068 = vmatpush.xpose.msra.mxu0 0.0
        %1069 = vmatpush.xpose.msra.mxu0 0.0
        %1070 = vmatpush.xpose.msra.mxu0 0.0
        %1071 = vmatpush.xpose.msra.mxu0 %v1054
        %1072 = vmatmul.f32.gmra.mxu0 %v1052
        %v1073 = vpop.f32.mrf.mxu0
        %v1074 = vadd.f32 0.0, %v1073
        %1075 = vdwg.mxu0
        %v1076 = vsel %vm843, %v1074, -inf
        %1077 = vmax.xlane.f32.xlu0 %v1076
        %v1078 = vpop.xlane.xlu0 %1077
        %v1079 = vsub.f32 %v1074, %v1078
        %v1080 = vmul.f32 %v1079, 1.442695
        %v1081 = vpow.pop %v1080
        %v1082 = vsel %vm843, %v1081, 0.0
        %1083 = vadd.xlane.f32.xlu0 %v1082
        %v1084 = vpop.xlane.xlu0 %1083
        %v1085 = vrcp.pop %v1084
        %v1086 = vmul.f32 %v1081, %v1085
        %1087 = vrot.lane.b32.xlu0 %v838, 40
        %v1088 = vpop.permute.xlu0 %1087
        %v1091 = vsel %vm843, %v1086, 0
        %1093 = vmatpush.msra.mxu0 0.0
        %1094 = vmatpush.msra.mxu0 0.0
        %1095 = vmatpush.msra.mxu0 0.0
        %1096 = vmatpush.msra.mxu0 0.0
        %1097 = vmatpush.msra.mxu0 0.0
        %1098 = vmatpush.msra.mxu0 0.0
        %1099 = vmatpush.msra.mxu0 0.0
        %1100 = vmatpush.msra.mxu0 0.0
        %1101 = vmatpush.msra.mxu0 0.0
        %1102 = vmatpush.msra.mxu0 0.0
        %1103 = vmatpush.msra.mxu0 0.0
        %1104 = vmatpush.msra.mxu0 0.0
        %1105 = vmatpush.msra.mxu0 0.0
        %1106 = vmatpush.msra.mxu0 0.0
        %1107 = vmatpush.msra.mxu0 0.0
        %1108 = vmatpush.msra.mxu0 %v1088
        %1109 = vmatmul.f32.gmra.mxu0 %v1091
        %v1110 = vpop.f32.mrf.mxu0
        %v1111 = vadd.f32 0.0, %v1110
        %1112 = vdwg.mxu0
        %1114 = vrot.lane.b32.xlu0 %v1111, 24
        %v1115 = vpop.permute.xlu0 %1114
        %vm1117 = vcmask 261312
        %1118 = vst.msk [vmem:[#allocation2] sm:$0xff] %vm1117, %v1115
        %v1119 = vld [vmem:[#allocation2] sm:$0xff]
        %v1120 = vld [vmem:[%s744] sm:$0xff]
        %v1121 = vld [vmem:[%s744 + $0x8] sm:$0xff]
        %v1122 = vld [vmem:[%s744 + $0x10] sm:$0xff]
        %v1123 = vld [vmem:[%s744 + $0x18] sm:$0xff]
        %v1124 = vld [vmem:[%s621] sm:$0x1]
        %v1126 = vperm.slane %v1124, 0
        %v1129 = vsel %vm771, %v1119, 0
        %1131 = vmatpush.msra.mxu0 0.0
        %1132 = vmatpush.msra.mxu0 0.0
        %1133 = vmatpush.msra.mxu0 0.0
        %1134 = vmatpush.msra.mxu0 0.0
        %1135 = vmatpush.msra.mxu0 0.0
        %1136 = vmatpush.msra.mxu0 0.0
        %1137 = vmatpush.msra.mxu0 0.0
        %1138 = vmatpush.msra.mxu0 0.0
        %1139 = vmatpush.msra.mxu0 0.0
        %1140 = vmatpush.msra.mxu0 0.0
        %1141 = vmatpush.msra.mxu0 0.0
        %1142 = vmatpush.msra.mxu0 0.0
        %1143 = vmatpush.msra.mxu0 %v1123
        %1144 = vmatpush.msra.mxu0 %v1122
        %1145 = vmatpush.msra.mxu0 %v1121
        %1146 = vmatpush.msra.mxu0 %v1120
        %1147 = vmatmul.f32.gmra.mxu0 %v1129
        %v1148 = vpop.f32.mrf.mxu0
        %v1149 = vadd.f32 %v1126, %v1148
        %1150 = vdwg.mxu0
        %v1151 = vadd.f32 %v768, %v1149
        %v1152 = vld [vmem:[%s630] sm:$0x1]
        %v1153 = vld [vmem:[%s747] sm:$0x1]
        %v1154 = vsel %vm771, %v1151, 0.0
        %1155 = vadd.xlane.f32.xlu0 %v1154
        %v1156 = vpop.xlane.xlu0 %1155
        %v1157 = vmul.f32 %v1156, %v781
        %v1158 = vsub.f32 %v1151, %v1157
        %v1159 = vmul.f32 %v1158, %v1158
        %v1160 = vsel %vm771, %v1159, 0.0
        %1161 = vadd.xlane.f32.xlu0 %v1160
        %v1162 = vpop.xlane.xlu0 %1161
        %v1163 = vmul.f32 %v1162, %v781
        %v1164 = vadd.f32 %v1163, 1e-08
        %v1165 = vrsqrt.pop %v1164
        %v1166 = vmul.f32 %v1165, %v1164
        %v1167 = vmul.f32 %v1166, %v1165
        %v1168 = vmul.f32 0.5, %v1167
        %v1169 = vsub.f32 1.5, %v1168
        %v1170 = vmul.f32 %v1165, %v1169
        %vm1171 = vweird.f32 %v1164
        %vm1172 = vweird.f32 %v1165
        %vm1173 = vmor %vm1171, %vm1172
        %v1174 = vsel %vm1173, %v1165, %v1170
        %v1175 = vmul.f32 %v1158, %v1174
        %v1177 = vperm.slane %v1152, 0
        %v1179 = vmul.f32 %v1175, %v1177
        %v1181 = vperm.slane %v1153, 0
        %v1183 = vadd.f32 %v1179, %v1181
        %v1184 = vld [vmem:[%s752] sm:$0xff]
        %v1185 = vld [vmem:[%s752 + $0x8] sm:$0xff]
        %v1186 = vld [vmem:[%s752 + $0x10] sm:$0xff]
        %v1187 = vld [vmem:[%s752 + $0x18] sm:$0xff]
        %v1188 = vld [vmem:[%s639] sm:$0x1]
        %v1190 = vperm.slane %v1188, 0
        %v1193 = vsel %vm771, %v1183, 0
        %1195 = vmatpush.msra.mxu0 0.0
        %1196 = vmatpush.msra.mxu0 0.0
        %1197 = vmatpush.msra.mxu0 0.0
        %1198 = vmatpush.msra.mxu0 0.0
        %1199 = vmatpush.msra.mxu0 0.0
        %1200 = vmatpush.msra.mxu0 0.0
        %1201 = vmatpush.msra.mxu0 0.0
        %1202 = vmatpush.msra.mxu0 0.0
        %1203 = vmatpush.msra.mxu0 0.0
        %1204 = vmatpush.msra.mxu0 0.0
        %1205 = vmatpush.msra.mxu0 0.0
        %1206 = vmatpush.msra.mxu0 0.0
        %1207 = vmatpush.msra.mxu0 %v1187
        %1208 = vmatpush.msra.mxu0 %v1186
        %1209 = vmatpush.msra.mxu0 %v1185
        %1210 = vmatpush.msra.mxu0 %v1184
        %1211 = vmatmul.f32.gmra.mxu0 %v1193
        %v1212 = vpop.f32.mrf.mxu0
        %v1213 = vadd.f32 %v1190, %v1212
        %1214 = vdwg.mxu0
        %v1215 = vmax.f32 %v1213, 0.0
        %v1216 = vld [vmem:[%s757] sm:$0xff]
        %v1217 = vld [vmem:[%s757 + $0x8] sm:$0xff]
        %v1218 = vld [vmem:[%s757 + $0x10] sm:$0xff]
        %v1219 = vld [vmem:[%s757 + $0x18] sm:$0xff]
        %v1220 = vld [vmem:[%s757 + $0x20] sm:$0xff]
        %v1221 = vld [vmem:[%s757 + $0x28] sm:$0xff]
        %v1222 = vld [vmem:[%s757 + $0x30] sm:$0xff]
        %v1223 = vld [vmem:[%s757 + $0x38] sm:$0xff]
        %v1224 = vld [vmem:[%s760] sm:$0x1]
        %v1226 = vperm.slane %v1224, 0
        %vm1228 = vcmask 523264
        %v1230 = vsel %vm1228, %v1215, 0
        %1232 = vmatpush.msra.mxu0 0.0
        %1233 = vmatpush.msra.mxu0 0.0
        %1234 = vmatpush.msra.mxu0 0.0
        %1235 = vmatpush.msra.mxu0 0.0
        %1236 = vmatpush.msra.mxu0 0.0
        %1237 = vmatpush.msra.mxu0 0.0
        %1238 = vmatpush.msra.mxu0 0.0
        %1239 = vmatpush.msra.mxu0 0.0
        %1240 = vmatpush.msra.mxu0 %v1223
        %1241 = vmatpush.msra.mxu0 %v1222
        %1242 = vmatpush.msra.mxu0 %v1221
        %1243 = vmatpush.msra.mxu0 %v1220
        %1244 = vmatpush.msra.mxu0 %v1219
        %1245 = vmatpush.msra.mxu0 %v1218
        %1246 = vmatpush.msra.mxu0 %v1217
        %1247 = vmatpush.msra.mxu0 %v1216
        %1248 = vmatmul.f32.gmra.mxu0 %v1230
        %v1249 = vpop.f32.mrf.mxu0
        %v1250 = vadd.f32 %v1226, %v1249
        %1251 = vdwg.mxu0
        %v1252 = vadd.f32 %v1151, %v1250
        %1253 = vst.msk [vmem:[%s731] sm:$0xff] %vm771, %v1252
        %s1254 = sand.u32 %s397, 1
        %s1255 = scalar_lea.sflag [#allocation5], %s1254
        %s1256 = sand.u32 %s397, 1
        %s1257 = smul.addr %s1256, 8
        %s1258 = scalar_lea.vmem [#allocation14], %s1257
        // Predicated region
        $region101: #{tpu_custom_call.1} parent=71 // pred_check
          %p1259 = pneg %p407
        $region102: #{tpu_custom_call.1} parent=71 // pred_check_branch
          %1261 = sbr.rel (%p1259) target = $region104
        $region103: #{tpu_custom_call.1} parent=71 // pred_region
          %1263 = vsyncadd %s1255, 0
          %s1264 = smul.addr %s43, 8
          %s1265 = scalar_lea.hbm %s13, %s1264
          %s1267 = sshll.u32 %s1258, 4
          %s1268 = int_to_ptr.vmem [resolvable:$true] %s1267
          %s1269 = sshll.u32 %s1265, 4
          %s1270 = int_to_ptr.hbm [resolvable:$true] %s1269
          %1272 = dma.vmem_to_hbm [thread:$0]  %s1268, 128, %s1270, %s1255
        $region104: #{tpu_custom_call.1} parent=71 // pred_fallthru
          _
      $region72: #{tpu_custom_call.1} parent=5 // pred_fallthru
        _
      %p1273 = scmp.le.s32.totalorder 2, %s34
      // Predicated region
      $region105: #{tpu_custom_call.1} parent=5 // pred_check
        %p1274 = pneg %p1273
      $region106: #{tpu_custom_call.1} parent=5 // pred_check_branch
        %1276 = sbr.rel (%p1274) target = $region108
      $region107: #{tpu_custom_call.1} parent=5 // pred_region
        %s1277 = ssub.s32 %s34, 2
        // Predicated region
        $region109: #{tpu_custom_call.1} parent=107 // pred_check
          %p1278 = pneg %p413
        $region110: #{tpu_custom_call.1} parent=107 // pred_check_branch
          %1280 = sbr.rel (%p1278) target = $region112
        $region111: #{tpu_custom_call.1} parent=107 // pred_region
          %s1281 = sand.u32 %s398, 1
          %s1282 = scalar_lea.sflag [#allocation5], %s1281
          %s1283 = sand.u32 %s398, 1
          %s1284 = smul.addr %s1283, 8
          %s1285 = scalar_lea.vmem [#allocation14], %s1284
          %1287 = dma.done %s1282, 128
        $region112: #{tpu_custom_call.1} parent=107 // pred_fallthru
          _
      $region108: #{tpu_custom_call.1} parent=5 // pred_fallthru
        _
    $region6: #{tpu_custom_call.1} parent=1 // loop_footer
      %s38 = sadd.s32 1, %s34
    $region7: #{tpu_custom_call.1} parent=1 // loop_footer_branch
      %33 = sbr.rel target = $region3
    $region8: #{tpu_custom_call.1} parent=1 // loop_exit
      _
    %1288 = vsyncpa [#allocation4], 1
    %s1289 = scalar_lea.sflag [#allocation4], 1
    %1290 = vsyncpa %s1289, 1
    %1291 = vsyncpa [#allocation7], 1
    %s1292 = scalar_lea.sflag [#allocation7], 1
    %1293 = vsyncpa %s1292, 1
    %1294 = vsyncpa [#allocation10], 1
    %s1295 = scalar_lea.sflag [#allocation10], 1
    %1296 = vsyncpa %s1295, 1
    %1297 = vsyncpa [#allocation13], 1
    %s1298 = scalar_lea.sflag [#allocation13], 1
    %1299 = vsyncpa %s1298, 1
    %1300 = vsyncpa [#allocation5], 1
    %s1301 = scalar_lea.sflag [#allocation5], 1
    %1302 = vsyncpa %s1301, 1

</llo_original>
